<compile_context>
chip_gen: v7x
topology: tpu7x:2x2x1
jax: 0.10.0
libtpu: 0.0.40
codegen_flags: <defaults>
</compile_context>

<pallas_src>
import jax
import jax.numpy as jnp
from jax.experimental import pallas as pl
from jax.experimental.pallas import tpu as pltpu


def _lstm_cell(x_t, h, c, w_ih, w_hh, b):
    """PyTorch-style LSTM cell (gate order [i,f,g,o]) — used by the reference."""
    gates = (jnp.dot(x_t, w_ih, preferred_element_type=jnp.float32)
             + jnp.dot(h, w_hh, preferred_element_type=jnp.float32)
             + b)                                   # (B, 4H)
    H = h.shape[-1]
    i = jax.nn.sigmoid(gates[:, 0 * H:1 * H])
    f = jax.nn.sigmoid(gates[:, 1 * H:2 * H])
    g = jnp.tanh(gates[:, 2 * H:3 * H])
    o = jax.nn.sigmoid(gates[:, 3 * H:4 * H])
    c_new = f * c + i * g
    h_new = o * jnp.tanh(c_new)
    return h_new, c_new


def bilstm_kernel(x_ref, mask_ref, w_in_ref, w_rec_ref, b_ref, out_ref):
    """Fused bidirectional LSTM over one batch block.

    x_ref    : (Bb, T, 2E)  [x_t | x_{T-1-t}]  (backward input pre-flipped in time)
    mask_ref : (Bb, T, 2H)  1.0 where the (fwd|bwd) state should update at step t
    w_in_ref : (2E, 8H)     block-diagonal input weights (gate-major layout)
    w_rec_ref: (2H, 8H)     block-diagonal recurrent weights
    b_ref    : (1, 8H)      combined biases
    out_ref  : (Bb, 1, 2H)  [h_f_final | h_b_final]

    Gate layout along 8H: [i_f,i_b, f_f,f_b, o_f,o_b, g_f,g_b], each H wide, so
    all sigmoid gates are a single contiguous 6H slice, tanh the trailing 2H.
    """
    x = x_ref[...]                     # (Bb, T, 2E)
    m = mask_ref[...]                  # (Bb, T, 2H)
    Bb, T, E2 = x.shape
    H2 = w_rec_ref.shape[0]            # 2H
    G = w_rec_ref.shape[1]             # 8H

    w_in = w_in_ref[...]
    w_rec = w_rec_ref[...]
    b = b_ref[...]

    # Hoisted input projection: one MXU call covers every timestep of both
    # directions; nothing input-dependent remains on the serial chain.
    xp = jnp.dot(x.reshape(Bb * T, E2), w_in,
                 preferred_element_type=jnp.float32) + b          # (Bb*T, 8H)
    xp = xp.reshape(Bb, T, G)

    h = jnp.zeros((Bb, H2), jnp.float32)      # [h_f | h_b]
    c = jnp.zeros((Bb, H2), jnp.float32)      # [c_f | c_b]

    # T is small and static: Python unroll is fine and helps the LLO scheduler.
    # For large T, switch to lax.fori_loop with a pl.ds slice of xp instead.
    for t in range(T):
        gates = xp[:, t, :] + jnp.dot(h, w_rec,
                                      preferred_element_type=jnp.float32)  # (Bb, 8H)
        sig = jax.nn.sigmoid(gates[:, :3 * H2])      # one wide EUP push: [i | f | o]
        i_g = sig[:, 0 * H2:1 * H2]
        f_g = sig[:, 1 * H2:2 * H2]
        o_g = sig[:, 2 * H2:3 * H2]
        g_g = jnp.tanh(gates[:, 3 * H2:4 * H2])
        c_new = f_g * c + i_g * g_g
        h_new = o_g * jnp.tanh(c_new)
        mk = m[:, t, :]                               # (Bb, 2H)
        h = jnp.where(mk > 0.0, h_new, h)
        c = jnp.where(mk > 0.0, c_new, c)

    out_ref[...] = h.reshape(Bb, 1, H2)


def _pack_bilstm_weights(params):
    """Repack PyTorch-layout per-direction weights into the fused kernel layout."""
    G4 = params["wih_f"].shape[1]
    H = G4 // 4

    def gate_blocks(w):   # PyTorch gate order along the 4H axis: i, f, g, o
        return (w[..., 0:H], w[..., H:2 * H], w[..., 2 * H:3 * H], w[..., 3 * H:4 * H])

    def block_diag(wf, wb):
        i_f, f_f, g_f, o_f = gate_blocks(wf)
        i_b, f_b, g_b, o_b = gate_blocks(wb)
        zf = jnp.zeros_like(i_f)
        zb = jnp.zeros_like(i_b)
        top = jnp.concatenate([i_f, zf, f_f, zf, o_f, zf, g_f, zf], axis=-1)
        bot = jnp.concatenate([zb, i_b, zb, f_b, zb, o_b, zb, g_b], axis=-1)
        return jnp.concatenate([top, bot], axis=0)

    w_in = block_diag(params["wih_f"], params["wih_b"])       # (2E, 8H)
    w_rec = block_diag(params["whh_f"], params["whh_b"])      # (2H, 8H)

    bi_f, bf_f, bg_f, bo_f = gate_blocks(params["b_f"])
    bi_b, bf_b, bg_b, bo_b = gate_blocks(params["b_b"])
    bias = jnp.concatenate([bi_f, bi_b, bf_f, bf_b, bo_f, bo_b, bg_f, bg_b],
                           axis=-1)                           # (1, 8H)
    return w_in, w_rec, bias


def _pick_batch_block(B):
    """Largest batch block that still yields >=2 grid steps (v7x has 2 TCs)."""
    for bb in (8, 4, 2, 1):
        if B % bb == 0 and B // bb >= 2:
            return bb
    return B


def init_params(key, vocab_size, embedded_size, hidden_size):
    """Deterministic synthetic parameters (shapes match nn.Embedding + nn.LSTM)."""
    ks = jax.random.split(key, 13)
    emb = 0.1 * jax.random.normal(ks[0], (vocab_size, embedded_size), jnp.float32)
    emb = emb.at[0].set(0.0)                    # padding_idx=0
    s = 1.0 / float(hidden_size) ** 0.5

    def u(k, shape):
        return jax.random.uniform(k, shape, jnp.float32, -s, s)

    G = 4 * hidden_size
    return {
        "embedding": emb,
        # forward direction (weights pre-transposed for x @ W, PyTorch [i,f,g,o])
        "wih_f": u(ks[1], (embedded_size, G)),
        "whh_f": u(ks[2], (hidden_size, G)),
        "b_f": u(ks[3], (1, G)) + u(ks[4], (1, G)),     # b_ih + b_hh
        # backward direction
        "wih_b": u(ks[5], (embedded_size, G)),
        "whh_b": u(ks[6], (hidden_size, G)),
        "b_b": u(ks[7], (1, G)) + u(ks[8], (1, G)),
    }


def instruction_encoder_forward(params, X, valid_length):
    """Embedding lookup + weight/mask packing (glue) + fused Pallas BiLSTM kernel."""
    x_emb = jnp.take(params["embedding"], X, axis=0).astype(jnp.float32)  # (B,T,E)
    B, T, E = x_emb.shape
    H = params["whh_f"].shape[0]

    # Backward direction reads the sequence reversed; concatenating the flipped
    # copy on the feature axis lets one block-diagonal matmul project both.
    x_pair = jnp.concatenate([x_emb, x_emb[:, ::-1, :]], axis=-1)         # (B,T,2E)

    # pack_padded_sequence semantics as a per-(step, direction) update mask.
    lens = valid_length.astype(jnp.int32).reshape(B, 1)
    t_idx = jnp.arange(T, dtype=jnp.int32)[None, :]
    m_f = (t_idx < lens)                      # fwd step t consumes x[:, t]
    m_b = ((T - 1 - t_idx) < lens)            # bwd step t consumes x[:, T-1-t]
    mask = jnp.concatenate(
        [jnp.broadcast_to(m_f[:, :, None], (B, T, H)),
         jnp.broadcast_to(m_b[:, :, None], (B, T, H))],
        axis=-1).astype(jnp.float32)          # (B, T, 2H)

    w_in, w_rec, bias = _pack_bilstm_weights(params)

    Bb = _pick_batch_block(B)
    grid = (B // Bb,)

    out = pl.pallas_call(
        bilstm_kernel,
        out_shape=jax.ShapeDtypeStruct((B, 1, 2 * H), jnp.float32),
        grid_spec=pltpu.PrefetchScalarGridSpec(
            num_scalar_prefetch=0,
            grid=grid,
            in_specs=[
                pl.BlockSpec((Bb, T, 2 * E), lambda i: (i, 0, 0)),   # x_pair
                pl.BlockSpec((Bb, T, 2 * H), lambda i: (i, 0, 0)),   # mask
                pl.BlockSpec((2 * E, 8 * H), lambda i: (0, 0)),      # w_in
                pl.BlockSpec((2 * H, 8 * H), lambda i: (0, 0)),      # w_rec
                pl.BlockSpec((1, 8 * H), lambda i: (0, 0)),          # bias
            ],
            out_specs=pl.BlockSpec((Bb, 1, 2 * H), lambda i: (i, 0, 0)),
        ),
        compiler_params=pltpu.CompilerParams(
            dimension_semantics=("parallel",)),
    )(x_pair, mask, w_in, w_rec, bias)

    return out.reshape(B, 2 * H)


def instruction_encoder_reference(params, X, valid_length):
    """Pure-JAX reference (per-direction PyTorch-style cell, identical semantics)."""
    x = jnp.take(params["embedding"], X, axis=0).astype(jnp.float32)
    B, T, _E = x.shape
    H = params["whh_f"].shape[0]
    lens = valid_length.astype(jnp.int32).reshape(B, 1)

    def run(wih, whh, b, order):
        h = jnp.zeros((B, H), jnp.float32)
        c = jnp.zeros((B, H), jnp.float32)
        for t in order:
            h_new, c_new = _lstm_cell(x[:, t, :], h, c, wih, whh, b)
            msk = t < lens
            h = jnp.where(msk, h_new, h)
            c = jnp.where(msk, c_new, c)
        return h

    h_f = run(params["wih_f"], params["whh_f"], params["b_f"], range(T))
    h_b = run(params["wih_b"], params["whh_b"], params["b_b"], range(T - 1, -1, -1))
    return jnp.concatenate([h_f, h_b], axis=-1)


if __name__ == "__main__":
    # Small shapes consistent with the module's forward:
    #   X: (batch=2, seq=8) int token ids, vocab=32, embedded=16, hidden=32.
    B, T, VOCAB, E, H = 2, 8, 32, 16, 32

    key = jax.random.PRNGKey(0)
    k_param, k_ids = jax.random.split(key)
    params = init_params(k_param, VOCAB, E, H)

    X = jax.random.randint(k_ids, (B, T), 1, VOCAB, dtype=jnp.int32)
    valid_length = jnp.array([T, 5], dtype=jnp.int32)
    # zero-pad past valid length (padding token id = 0), like the PyTorch input
    t_idx = jnp.arange(T)[None, :]
    X = jnp.where(t_idx < valid_length[:, None], X, 0)

    out = instruction_encoder_forward(params, X, valid_length)
    out = jax.block_until_ready(out)

    ref = instruction_encoder_reference(params, X, valid_length)
    assert out.shape == (B, 2 * H), out.shape
    err = jnp.max(jnp.abs(out - ref))
    assert jnp.allclose(out, ref, atol=5e-4, rtol=5e-4), f"mismatch vs reference, max|err|={err}"

    print("KERNEL_OK")
</pallas_src>

<mosaic_0001>
module attributes {stable_mosaic.version = 11 : i64} {
  func.func @bilstm_kernel(%arg0: i32, %arg1: memref<1x8x32xf32, #tpu.memory_space<vmem>>, %arg2: memref<1x8x64xf32, #tpu.memory_space<vmem>>, %arg3: memref<32x256xf32, #tpu.memory_space<vmem>>, %arg4: memref<64x256xf32, #tpu.memory_space<vmem>>, %arg5: memref<1x256xf32, #tpu.memory_space<vmem>>, %arg6: memref<1x1x64xf32, #tpu.memory_space<vmem>>) attributes {dimension_semantics = [#tpu.dimension_semantics<parallel>], iteration_bounds = array<i64: 2>, scalar_prefetch = 0 : i64, scratch_operands = 0 : i64, tpu.core_type = #tpu.core_type<tc>, window_params = [{transform_indices = @transform_0, window_bounds = array<i64: 1, 8, 32>}, {transform_indices = @transform_1, window_bounds = array<i64: 1, 8, 64>}, {pipeline_mode = #tpu.pipeline_mode<synchronous>, transform_indices = @transform_2, window_bounds = array<i64: 32, 256>}, {pipeline_mode = #tpu.pipeline_mode<synchronous>, transform_indices = @transform_3, window_bounds = array<i64: 64, 256>}, {pipeline_mode = #tpu.pipeline_mode<synchronous>, transform_indices = @transform_4, window_bounds = array<i64: 1, 256>}, {transform_indices = @transform_5, window_bounds = array<i64: 1, 1, 64>}]} {
    %c0 = arith.constant 0 : index
    %c0_0 = arith.constant 0 : index
    %c0_1 = arith.constant 0 : index
    %0 = vector.load %arg1[%c0, %c0_0, %c0_1] : memref<1x8x32xf32, #tpu.memory_space<vmem>>, vector<1x8x32xf32>
    %c0_2 = arith.constant 0 : index
    %c0_3 = arith.constant 0 : index
    %c0_4 = arith.constant 0 : index
    %1 = vector.load %arg2[%c0_2, %c0_3, %c0_4] : memref<1x8x64xf32, #tpu.memory_space<vmem>>, vector<1x8x64xf32>
    %c0_5 = arith.constant 0 : index
    %c0_6 = arith.constant 0 : index
    %2 = vector.load %arg3[%c0_5, %c0_6] : memref<32x256xf32, #tpu.memory_space<vmem>>, vector<32x256xf32>
    %c0_7 = arith.constant 0 : index
    %c0_8 = arith.constant 0 : index
    %3 = vector.load %arg4[%c0_7, %c0_8] : memref<64x256xf32, #tpu.memory_space<vmem>>, vector<64x256xf32>
    %c0_9 = arith.constant 0 : index
    %c0_10 = arith.constant 0 : index
    %4 = vector.load %arg5[%c0_9, %c0_10] : memref<1x256xf32, #tpu.memory_space<vmem>>, vector<1x256xf32>
    %5 = vector.shape_cast %0 : vector<1x8x32xf32> to vector<8x32xf32>
    %cst = arith.constant dense<0.000000e+00> : vector<8x256xf32>
    %6 = tpu.matmul %5, %2, %cst {dimension_numbers = #tpu.dot_dimension_numbers<[1], [0], [0], [1], [0, 0, 1, 1], [], []>} : vector<8x32xf32>, vector<32x256xf32>, vector<8x256xf32> -> vector<8x256xf32>
    %7 = vector.broadcast %4 : vector<1x256xf32> to vector<8x256xf32>
    %8 = arith.addf %6, %7 : vector<8x256xf32>
    %9 = vector.shape_cast %8 : vector<8x256xf32> to vector<1x8x256xf32>
    %cst_11 = arith.constant 0.000000e+00 : f32
    %10 = vector.broadcast %cst_11 : f32 to vector<1x64xf32>
    %cst_12 = arith.constant 0.000000e+00 : f32
    %11 = vector.broadcast %cst_12 : f32 to vector<1x64xf32>
    %12 = vector.extract_strided_slice %9 {offsets = [0, 0, 0], sizes = [1, 1, 256], strides = [1, 1, 1]} : vector<1x8x256xf32> to vector<1x1x256xf32>
    %13 = vector.shape_cast %12 : vector<1x1x256xf32> to vector<1x256xf32>
    %cst_13 = arith.constant dense<0.000000e+00> : vector<1x256xf32>
    %14 = tpu.matmul %10, %3, %cst_13 {dimension_numbers = #tpu.dot_dimension_numbers<[1], [0], [0], [1], [0, 0, 1, 1], [], []>} : vector<1x64xf32>, vector<64x256xf32>, vector<1x256xf32> -> vector<1x256xf32>
    %15 = arith.addf %13, %14 : vector<1x256xf32>
    %16 = vector.extract_strided_slice %15 {offsets = [0, 0], sizes = [1, 192], strides = [1, 1]} : vector<1x256xf32> to vector<1x192xf32>
    %17 = arith.negf %16 : vector<1x192xf32>
    %18 = math.exp %17 : vector<1x192xf32>
    %cst_14 = arith.constant 1.000000e+00 : f32
    %19 = vector.broadcast %cst_14 : f32 to vector<1x192xf32>
    %20 = arith.addf %19, %18 : vector<1x192xf32>
    %21 = arith.divf %19, %20 : vector<1x192xf32>
    %22 = vector.extract_strided_slice %21 {offsets = [0, 0], sizes = [1, 64], strides = [1, 1]} : vector<1x192xf32> to vector<1x64xf32>
    %23 = vector.extract_strided_slice %21 {offsets = [0, 64], sizes = [1, 64], strides = [1, 1]} : vector<1x192xf32> to vector<1x64xf32>
    %24 = vector.extract_strided_slice %21 {offsets = [0, 128], sizes = [1, 64], strides = [1, 1]} : vector<1x192xf32> to vector<1x64xf32>
    %25 = vector.extract_strided_slice %15 {offsets = [0, 192], sizes = [1, 64], strides = [1, 1]} : vector<1x256xf32> to vector<1x64xf32>
    %26 = math.tanh %25 : vector<1x64xf32>
    %27 = arith.mulf %23, %11 : vector<1x64xf32>
    %28 = arith.mulf %22, %26 : vector<1x64xf32>
    %29 = arith.addf %27, %28 : vector<1x64xf32>
    %30 = math.tanh %29 : vector<1x64xf32>
    %31 = arith.mulf %24, %30 : vector<1x64xf32>
    %32 = vector.extract_strided_slice %1 {offsets = [0, 0, 0], sizes = [1, 1, 64], strides = [1, 1, 1]} : vector<1x8x64xf32> to vector<1x1x64xf32>
    %33 = vector.shape_cast %32 : vector<1x1x64xf32> to vector<1x64xf32>
    %cst_15 = arith.constant 0.000000e+00 : f32
    %34 = vector.broadcast %cst_15 : f32 to vector<1x64xf32>
    %35 = arith.cmpf ogt, %33, %34 : vector<1x64xf32>
    %36 = arith.select %35, %31, %10 : vector<1x64xi1>, vector<1x64xf32>
    %cst_16 = arith.constant 0.000000e+00 : f32
    %37 = vector.broadcast %cst_16 : f32 to vector<1x64xf32>
    %38 = arith.cmpf ogt, %33, %37 : vector<1x64xf32>
    %39 = arith.select %38, %29, %11 : vector<1x64xi1>, vector<1x64xf32>
    %40 = vector.extract_strided_slice %9 {offsets = [0, 1, 0], sizes = [1, 1, 256], strides = [1, 1, 1]} : vector<1x8x256xf32> to vector<1x1x256xf32>
    %41 = vector.shape_cast %40 : vector<1x1x256xf32> to vector<1x256xf32>
    %cst_17 = arith.constant dense<0.000000e+00> : vector<1x256xf32>
    %42 = tpu.matmul %36, %3, %cst_17 {dimension_numbers = #tpu.dot_dimension_numbers<[1], [0], [0], [1], [0, 0, 1, 1], [], []>} : vector<1x64xf32>, vector<64x256xf32>, vector<1x256xf32> -> vector<1x256xf32>
    %43 = arith.addf %41, %42 : vector<1x256xf32>
    %44 = vector.extract_strided_slice %43 {offsets = [0, 0], sizes = [1, 192], strides = [1, 1]} : vector<1x256xf32> to vector<1x192xf32>
    %45 = arith.negf %44 : vector<1x192xf32>
    %46 = math.exp %45 : vector<1x192xf32>
    %cst_18 = arith.constant 1.000000e+00 : f32
    %47 = vector.broadcast %cst_18 : f32 to vector<1x192xf32>
    %48 = arith.addf %47, %46 : vector<1x192xf32>
    %49 = arith.divf %47, %48 : vector<1x192xf32>
    %50 = vector.extract_strided_slice %49 {offsets = [0, 0], sizes = [1, 64], strides = [1, 1]} : vector<1x192xf32> to vector<1x64xf32>
    %51 = vector.extract_strided_slice %49 {offsets = [0, 64], sizes = [1, 64], strides = [1, 1]} : vector<1x192xf32> to vector<1x64xf32>
    %52 = vector.extract_strided_slice %49 {offsets = [0, 128], sizes = [1, 64], strides = [1, 1]} : vector<1x192xf32> to vector<1x64xf32>
    %53 = vector.extract_strided_slice %43 {offsets = [0, 192], sizes = [1, 64], strides = [1, 1]} : vector<1x256xf32> to vector<1x64xf32>
    %54 = math.tanh %53 : vector<1x64xf32>
    %55 = arith.mulf %51, %39 : vector<1x64xf32>
    %56 = arith.mulf %50, %54 : vector<1x64xf32>
    %57 = arith.addf %55, %56 : vector<1x64xf32>
    %58 = math.tanh %57 : vector<1x64xf32>
    %59 = arith.mulf %52, %58 : vector<1x64xf32>
    %60 = vector.extract_strided_slice %1 {offsets = [0, 1, 0], sizes = [1, 1, 64], strides = [1, 1, 1]} : vector<1x8x64xf32> to vector<1x1x64xf32>
    %61 = vector.shape_cast %60 : vector<1x1x64xf32> to vector<1x64xf32>
    %cst_19 = arith.constant 0.000000e+00 : f32
    %62 = vector.broadcast %cst_19 : f32 to vector<1x64xf32>
    %63 = arith.cmpf ogt, %61, %62 : vector<1x64xf32>
    %64 = arith.select %63, %59, %36 : vector<1x64xi1>, vector<1x64xf32>
    %cst_20 = arith.constant 0.000000e+00 : f32
    %65 = vector.broadcast %cst_20 : f32 to vector<1x64xf32>
    %66 = arith.cmpf ogt, %61, %65 : vector<1x64xf32>
    %67 = arith.select %66, %57, %39 : vector<1x64xi1>, vector<1x64xf32>
    %68 = vector.extract_strided_slice %9 {offsets = [0, 2, 0], sizes = [1, 1, 256], strides = [1, 1, 1]} : vector<1x8x256xf32> to vector<1x1x256xf32>
    %69 = vector.shape_cast %68 : vector<1x1x256xf32> to vector<1x256xf32>
    %cst_21 = arith.constant dense<0.000000e+00> : vector<1x256xf32>
    %70 = tpu.matmul %64, %3, %cst_21 {dimension_numbers = #tpu.dot_dimension_numbers<[1], [0], [0], [1], [0, 0, 1, 1], [], []>} : vector<1x64xf32>, vector<64x256xf32>, vector<1x256xf32> -> vector<1x256xf32>
    %71 = arith.addf %69, %70 : vector<1x256xf32>
    %72 = vector.extract_strided_slice %71 {offsets = [0, 0], sizes = [1, 192], strides = [1, 1]} : vector<1x256xf32> to vector<1x192xf32>
    %73 = arith.negf %72 : vector<1x192xf32>
    %74 = math.exp %73 : vector<1x192xf32>
    %cst_22 = arith.constant 1.000000e+00 : f32
    %75 = vector.broadcast %cst_22 : f32 to vector<1x192xf32>
    %76 = arith.addf %75, %74 : vector<1x192xf32>
    %77 = arith.divf %75, %76 : vector<1x192xf32>
    %78 = vector.extract_strided_slice %77 {offsets = [0, 0], sizes = [1, 64], strides = [1, 1]} : vector<1x192xf32> to vector<1x64xf32>
    %79 = vector.extract_strided_slice %77 {offsets = [0, 64], sizes = [1, 64], strides = [1, 1]} : vector<1x192xf32> to vector<1x64xf32>
    %80 = vector.extract_strided_slice %77 {offsets = [0, 128], sizes = [1, 64], strides = [1, 1]} : vector<1x192xf32> to vector<1x64xf32>
    %81 = vector.extract_strided_slice %71 {offsets = [0, 192], sizes = [1, 64], strides = [1, 1]} : vector<1x256xf32> to vector<1x64xf32>
    %82 = math.tanh %81 : vector<1x64xf32>
    %83 = arith.mulf %79, %67 : vector<1x64xf32>
    %84 = arith.mulf %78, %82 : vector<1x64xf32>
    %85 = arith.addf %83, %84 : vector<1x64xf32>
    %86 = math.tanh %85 : vector<1x64xf32>
    %87 = arith.mulf %80, %86 : vector<1x64xf32>
    %88 = vector.extract_strided_slice %1 {offsets = [0, 2, 0], sizes = [1, 1, 64], strides = [1, 1, 1]} : vector<1x8x64xf32> to vector<1x1x64xf32>
    %89 = vector.shape_cast %88 : vector<1x1x64xf32> to vector<1x64xf32>
    %cst_23 = arith.constant 0.000000e+00 : f32
    %90 = vector.broadcast %cst_23 : f32 to vector<1x64xf32>
    %91 = arith.cmpf ogt, %89, %90 : vector<1x64xf32>
    %92 = arith.select %91, %87, %64 : vector<1x64xi1>, vector<1x64xf32>
    %cst_24 = arith.constant 0.000000e+00 : f32
    %93 = vector.broadcast %cst_24 : f32 to vector<1x64xf32>
    %94 = arith.cmpf ogt, %89, %93 : vector<1x64xf32>
    %95 = arith.select %94, %85, %67 : vector<1x64xi1>, vector<1x64xf32>
    %96 = vector.extract_strided_slice %9 {offsets = [0, 3, 0], sizes = [1, 1, 256], strides = [1, 1, 1]} : vector<1x8x256xf32> to vector<1x1x256xf32>
    %97 = vector.shape_cast %96 : vector<1x1x256xf32> to vector<1x256xf32>
    %cst_25 = arith.constant dense<0.000000e+00> : vector<1x256xf32>
    %98 = tpu.matmul %92, %3, %cst_25 {dimension_numbers = #tpu.dot_dimension_numbers<[1], [0], [0], [1], [0, 0, 1, 1], [], []>} : vector<1x64xf32>, vector<64x256xf32>, vector<1x256xf32> -> vector<1x256xf32>
    %99 = arith.addf %97, %98 : vector<1x256xf32>
    %100 = vector.extract_strided_slice %99 {offsets = [0, 0], sizes = [1, 192], strides = [1, 1]} : vector<1x256xf32> to vector<1x192xf32>
    %101 = arith.negf %100 : vector<1x192xf32>
    %102 = math.exp %101 : vector<1x192xf32>
    %cst_26 = arith.constant 1.000000e+00 : f32
    %103 = vector.broadcast %cst_26 : f32 to vector<1x192xf32>
    %104 = arith.addf %103, %102 : vector<1x192xf32>
    %105 = arith.divf %103, %104 : vector<1x192xf32>
    %106 = vector.extract_strided_slice %105 {offsets = [0, 0], sizes = [1, 64], strides = [1, 1]} : vector<1x192xf32> to vector<1x64xf32>
    %107 = vector.extract_strided_slice %105 {offsets = [0, 64], sizes = [1, 64], strides = [1, 1]} : vector<1x192xf32> to vector<1x64xf32>
    %108 = vector.extract_strided_slice %105 {offsets = [0, 128], sizes = [1, 64], strides = [1, 1]} : vector<1x192xf32> to vector<1x64xf32>
    %109 = vector.extract_strided_slice %99 {offsets = [0, 192], sizes = [1, 64], strides = [1, 1]} : vector<1x256xf32> to vector<1x64xf32>
    %110 = math.tanh %109 : vector<1x64xf32>
    %111 = arith.mulf %107, %95 : vector<1x64xf32>
    %112 = arith.mulf %106, %110 : vector<1x64xf32>
    %113 = arith.addf %111, %112 : vector<1x64xf32>
    %114 = math.tanh %113 : vector<1x64xf32>
    %115 = arith.mulf %108, %114 : vector<1x64xf32>
    %116 = vector.extract_strided_slice %1 {offsets = [0, 3, 0], sizes = [1, 1, 64], strides = [1, 1, 1]} : vector<1x8x64xf32> to vector<1x1x64xf32>
    %117 = vector.shape_cast %116 : vector<1x1x64xf32> to vector<1x64xf32>
    %cst_27 = arith.constant 0.000000e+00 : f32
    %118 = vector.broadcast %cst_27 : f32 to vector<1x64xf32>
    %119 = arith.cmpf ogt, %117, %118 : vector<1x64xf32>
    %120 = arith.select %119, %115, %92 : vector<1x64xi1>, vector<1x64xf32>
    %cst_28 = arith.constant 0.000000e+00 : f32
    %121 = vector.broadcast %cst_28 : f32 to vector<1x64xf32>
    %122 = arith.cmpf ogt, %117, %121 : vector<1x64xf32>
    %123 = arith.select %122, %113, %95 : vector<1x64xi1>, vector<1x64xf32>
    %124 = vector.extract_strided_slice %9 {offsets = [0, 4, 0], sizes = [1, 1, 256], strides = [1, 1, 1]} : vector<1x8x256xf32> to vector<1x1x256xf32>
    %125 = vector.shape_cast %124 : vector<1x1x256xf32> to vector<1x256xf32>
    %cst_29 = arith.constant dense<0.000000e+00> : vector<1x256xf32>
    %126 = tpu.matmul %120, %3, %cst_29 {dimension_numbers = #tpu.dot_dimension_numbers<[1], [0], [0], [1], [0, 0, 1, 1], [], []>} : vector<1x64xf32>, vector<64x256xf32>, vector<1x256xf32> -> vector<1x256xf32>
    %127 = arith.addf %125, %126 : vector<1x256xf32>
    %128 = vector.extract_strided_slice %127 {offsets = [0, 0], sizes = [1, 192], strides = [1, 1]} : vector<1x256xf32> to vector<1x192xf32>
    %129 = arith.negf %128 : vector<1x192xf32>
    %130 = math.exp %129 : vector<1x192xf32>
    %cst_30 = arith.constant 1.000000e+00 : f32
    %131 = vector.broadcast %cst_30 : f32 to vector<1x192xf32>
    %132 = arith.addf %131, %130 : vector<1x192xf32>
    %133 = arith.divf %131, %132 : vector<1x192xf32>
    %134 = vector.extract_strided_slice %133 {offsets = [0, 0], sizes = [1, 64], strides = [1, 1]} : vector<1x192xf32> to vector<1x64xf32>
    %135 = vector.extract_strided_slice %133 {offsets = [0, 64], sizes = [1, 64], strides = [1, 1]} : vector<1x192xf32> to vector<1x64xf32>
    %136 = vector.extract_strided_slice %133 {offsets = [0, 128], sizes = [1, 64], strides = [1, 1]} : vector<1x192xf32> to vector<1x64xf32>
    %137 = vector.extract_strided_slice %127 {offsets = [0, 192], sizes = [1, 64], strides = [1, 1]} : vector<1x256xf32> to vector<1x64xf32>
    %138 = math.tanh %137 : vector<1x64xf32>
    %139 = arith.mulf %135, %123 : vector<1x64xf32>
    %140 = arith.mulf %134, %138 : vector<1x64xf32>
    %141 = arith.addf %139, %140 : vector<1x64xf32>
    %142 = math.tanh %141 : vector<1x64xf32>
    %143 = arith.mulf %136, %142 : vector<1x64xf32>
    %144 = vector.extract_strided_slice %1 {offsets = [0, 4, 0], sizes = [1, 1, 64], strides = [1, 1, 1]} : vector<1x8x64xf32> to vector<1x1x64xf32>
    %145 = vector.shape_cast %144 : vector<1x1x64xf32> to vector<1x64xf32>
    %cst_31 = arith.constant 0.000000e+00 : f32
    %146 = vector.broadcast %cst_31 : f32 to vector<1x64xf32>
    %147 = arith.cmpf ogt, %145, %146 : vector<1x64xf32>
    %148 = arith.select %147, %143, %120 : vector<1x64xi1>, vector<1x64xf32>
    %cst_32 = arith.constant 0.000000e+00 : f32
    %149 = vector.broadcast %cst_32 : f32 to vector<1x64xf32>
    %150 = arith.cmpf ogt, %145, %149 : vector<1x64xf32>
    %151 = arith.select %150, %141, %123 : vector<1x64xi1>, vector<1x64xf32>
    %152 = vector.extract_strided_slice %9 {offsets = [0, 5, 0], sizes = [1, 1, 256], strides = [1, 1, 1]} : vector<1x8x256xf32> to vector<1x1x256xf32>
    %153 = vector.shape_cast %152 : vector<1x1x256xf32> to vector<1x256xf32>
    %cst_33 = arith.constant dense<0.000000e+00> : vector<1x256xf32>
    %154 = tpu.matmul %148, %3, %cst_33 {dimension_numbers = #tpu.dot_dimension_numbers<[1], [0], [0], [1], [0, 0, 1, 1], [], []>} : vector<1x64xf32>, vector<64x256xf32>, vector<1x256xf32> -> vector<1x256xf32>
    %155 = arith.addf %153, %154 : vector<1x256xf32>
    %156 = vector.extract_strided_slice %155 {offsets = [0, 0], sizes = [1, 192], strides = [1, 1]} : vector<1x256xf32> to vector<1x192xf32>
    %157 = arith.negf %156 : vector<1x192xf32>
    %158 = math.exp %157 : vector<1x192xf32>
    %cst_34 = arith.constant 1.000000e+00 : f32
    %159 = vector.broadcast %cst_34 : f32 to vector<1x192xf32>
    %160 = arith.addf %159, %158 : vector<1x192xf32>
    %161 = arith.divf %159, %160 : vector<1x192xf32>
    %162 = vector.extract_strided_slice %161 {offsets = [0, 0], sizes = [1, 64], strides = [1, 1]} : vector<1x192xf32> to vector<1x64xf32>
    %163 = vector.extract_strided_slice %161 {offsets = [0, 64], sizes = [1, 64], strides = [1, 1]} : vector<1x192xf32> to vector<1x64xf32>
    %164 = vector.extract_strided_slice %161 {offsets = [0, 128], sizes = [1, 64], strides = [1, 1]} : vector<1x192xf32> to vector<1x64xf32>
    %165 = vector.extract_strided_slice %155 {offsets = [0, 192], sizes = [1, 64], strides = [1, 1]} : vector<1x256xf32> to vector<1x64xf32>
    %166 = math.tanh %165 : vector<1x64xf32>
    %167 = arith.mulf %163, %151 : vector<1x64xf32>
    %168 = arith.mulf %162, %166 : vector<1x64xf32>
    %169 = arith.addf %167, %168 : vector<1x64xf32>
    %170 = math.tanh %169 : vector<1x64xf32>
    %171 = arith.mulf %164, %170 : vector<1x64xf32>
    %172 = vector.extract_strided_slice %1 {offsets = [0, 5, 0], sizes = [1, 1, 64], strides = [1, 1, 1]} : vector<1x8x64xf32> to vector<1x1x64xf32>
    %173 = vector.shape_cast %172 : vector<1x1x64xf32> to vector<1x64xf32>
    %cst_35 = arith.constant 0.000000e+00 : f32
    %174 = vector.broadcast %cst_35 : f32 to vector<1x64xf32>
    %175 = arith.cmpf ogt, %173, %174 : vector<1x64xf32>
    %176 = arith.select %175, %171, %148 : vector<1x64xi1>, vector<1x64xf32>
    %cst_36 = arith.constant 0.000000e+00 : f32
    %177 = vector.broadcast %cst_36 : f32 to vector<1x64xf32>
    %178 = arith.cmpf ogt, %173, %177 : vector<1x64xf32>
    %179 = arith.select %178, %169, %151 : vector<1x64xi1>, vector<1x64xf32>
    %180 = vector.extract_strided_slice %9 {offsets = [0, 6, 0], sizes = [1, 1, 256], strides = [1, 1, 1]} : vector<1x8x256xf32> to vector<1x1x256xf32>
    %181 = vector.shape_cast %180 : vector<1x1x256xf32> to vector<1x256xf32>
    %cst_37 = arith.constant dense<0.000000e+00> : vector<1x256xf32>
    %182 = tpu.matmul %176, %3, %cst_37 {dimension_numbers = #tpu.dot_dimension_numbers<[1], [0], [0], [1], [0, 0, 1, 1], [], []>} : vector<1x64xf32>, vector<64x256xf32>, vector<1x256xf32> -> vector<1x256xf32>
    %183 = arith.addf %181, %182 : vector<1x256xf32>
    %184 = vector.extract_strided_slice %183 {offsets = [0, 0], sizes = [1, 192], strides = [1, 1]} : vector<1x256xf32> to vector<1x192xf32>
    %185 = arith.negf %184 : vector<1x192xf32>
    %186 = math.exp %185 : vector<1x192xf32>
    %cst_38 = arith.constant 1.000000e+00 : f32
    %187 = vector.broadcast %cst_38 : f32 to vector<1x192xf32>
    %188 = arith.addf %187, %186 : vector<1x192xf32>
    %189 = arith.divf %187, %188 : vector<1x192xf32>
    %190 = vector.extract_strided_slice %189 {offsets = [0, 0], sizes = [1, 64], strides = [1, 1]} : vector<1x192xf32> to vector<1x64xf32>
    %191 = vector.extract_strided_slice %189 {offsets = [0, 64], sizes = [1, 64], strides = [1, 1]} : vector<1x192xf32> to vector<1x64xf32>
    %192 = vector.extract_strided_slice %189 {offsets = [0, 128], sizes = [1, 64], strides = [1, 1]} : vector<1x192xf32> to vector<1x64xf32>
    %193 = vector.extract_strided_slice %183 {offsets = [0, 192], sizes = [1, 64], strides = [1, 1]} : vector<1x256xf32> to vector<1x64xf32>
    %194 = math.tanh %193 : vector<1x64xf32>
    %195 = arith.mulf %191, %179 : vector<1x64xf32>
    %196 = arith.mulf %190, %194 : vector<1x64xf32>
    %197 = arith.addf %195, %196 : vector<1x64xf32>
    %198 = math.tanh %197 : vector<1x64xf32>
    %199 = arith.mulf %192, %198 : vector<1x64xf32>
    %200 = vector.extract_strided_slice %1 {offsets = [0, 6, 0], sizes = [1, 1, 64], strides = [1, 1, 1]} : vector<1x8x64xf32> to vector<1x1x64xf32>
    %201 = vector.shape_cast %200 : vector<1x1x64xf32> to vector<1x64xf32>
    %cst_39 = arith.constant 0.000000e+00 : f32
    %202 = vector.broadcast %cst_39 : f32 to vector<1x64xf32>
    %203 = arith.cmpf ogt, %201, %202 : vector<1x64xf32>
    %204 = arith.select %203, %199, %176 : vector<1x64xi1>, vector<1x64xf32>
    %cst_40 = arith.constant 0.000000e+00 : f32
    %205 = vector.broadcast %cst_40 : f32 to vector<1x64xf32>
    %206 = arith.cmpf ogt, %201, %205 : vector<1x64xf32>
    %207 = arith.select %206, %197, %179 : vector<1x64xi1>, vector<1x64xf32>
    %208 = vector.extract_strided_slice %9 {offsets = [0, 7, 0], sizes = [1, 1, 256], strides = [1, 1, 1]} : vector<1x8x256xf32> to vector<1x1x256xf32>
    %209 = vector.shape_cast %208 : vector<1x1x256xf32> to vector<1x256xf32>
    %cst_41 = arith.constant dense<0.000000e+00> : vector<1x256xf32>
    %210 = tpu.matmul %204, %3, %cst_41 {dimension_numbers = #tpu.dot_dimension_numbers<[1], [0], [0], [1], [0, 0, 1, 1], [], []>} : vector<1x64xf32>, vector<64x256xf32>, vector<1x256xf32> -> vector<1x256xf32>
    %211 = arith.addf %209, %210 : vector<1x256xf32>
    %212 = vector.extract_strided_slice %211 {offsets = [0, 0], sizes = [1, 192], strides = [1, 1]} : vector<1x256xf32> to vector<1x192xf32>
    %213 = arith.negf %212 : vector<1x192xf32>
    %214 = math.exp %213 : vector<1x192xf32>
    %cst_42 = arith.constant 1.000000e+00 : f32
    %215 = vector.broadcast %cst_42 : f32 to vector<1x192xf32>
    %216 = arith.addf %215, %214 : vector<1x192xf32>
    %217 = arith.divf %215, %216 : vector<1x192xf32>
    %218 = vector.extract_strided_slice %217 {offsets = [0, 0], sizes = [1, 64], strides = [1, 1]} : vector<1x192xf32> to vector<1x64xf32>
    %219 = vector.extract_strided_slice %217 {offsets = [0, 64], sizes = [1, 64], strides = [1, 1]} : vector<1x192xf32> to vector<1x64xf32>
    %220 = vector.extract_strided_slice %217 {offsets = [0, 128], sizes = [1, 64], strides = [1, 1]} : vector<1x192xf32> to vector<1x64xf32>
    %221 = vector.extract_strided_slice %211 {offsets = [0, 192], sizes = [1, 64], strides = [1, 1]} : vector<1x256xf32> to vector<1x64xf32>
    %222 = math.tanh %221 : vector<1x64xf32>
    %223 = arith.mulf %219, %207 : vector<1x64xf32>
    %224 = arith.mulf %218, %222 : vector<1x64xf32>
    %225 = arith.addf %223, %224 : vector<1x64xf32>
    %226 = math.tanh %225 : vector<1x64xf32>
    %227 = arith.mulf %220, %226 : vector<1x64xf32>
    %228 = vector.extract_strided_slice %1 {offsets = [0, 7, 0], sizes = [1, 1, 64], strides = [1, 1, 1]} : vector<1x8x64xf32> to vector<1x1x64xf32>
    %229 = vector.shape_cast %228 : vector<1x1x64xf32> to vector<1x64xf32>
    %cst_43 = arith.constant 0.000000e+00 : f32
    %230 = vector.broadcast %cst_43 : f32 to vector<1x64xf32>
    %231 = arith.cmpf ogt, %229, %230 : vector<1x64xf32>
    %232 = arith.select %231, %227, %204 : vector<1x64xi1>, vector<1x64xf32>
    %233 = vector.shape_cast %232 : vector<1x64xf32> to vector<1x1x64xf32>
    %c0_44 = arith.constant 0 : index
    %c0_45 = arith.constant 0 : index
    %c0_46 = arith.constant 0 : index
    %234 = vector.load %arg6[%c0_44, %c0_45, %c0_46] : memref<1x1x64xf32, #tpu.memory_space<vmem>>, vector<1x1x64xf32>
    tpu.vector_store %arg6[%c0_44, %c0_45, %c0_46], %233 {strides = array<i32>} : memref<1x1x64xf32, #tpu.memory_space<vmem>>, vector<1x1x64xf32>,
    return
  }
  func.func @transform_0(%arg0: i32) -> (i32, i32, i32) {
    %c0_i32 = arith.constant 0 : i32
    %c0_i32_0 = arith.constant 0 : i32
    %c0_i32_1 = arith.constant 0 : i32
    return %arg0, %c0_i32, %c0_i32_0 : i32, i32, i32
  }
  func.func @transform_1(%arg0: i32) -> (i32, i32, i32) {
    %c0_i32 = arith.constant 0 : i32
    %c0_i32_0 = arith.constant 0 : i32
    %c0_i32_1 = arith.constant 0 : i32
    return %arg0, %c0_i32, %c0_i32_0 : i32, i32, i32
  }
  func.func @transform_2(%arg0: i32) -> (i32, i32) {
    %c0_i32 = arith.constant 0 : i32
    %c0_i32_0 = arith.constant 0 : i32
    %c0_i32_1 = arith.constant 0 : i32
    return %c0_i32, %c0_i32_0 : i32, i32
  }
  func.func @transform_3(%arg0: i32) -> (i32, i32) {
    %c0_i32 = arith.constant 0 : i32
    %c0_i32_0 = arith.constant 0 : i32
    %c0_i32_1 = arith.constant 0 : i32
    return %c0_i32, %c0_i32_0 : i32, i32
  }
  func.func @transform_4(%arg0: i32) -> (i32, i32) {
    %c0_i32 = arith.constant 0 : i32
    %c0_i32_0 = arith.constant 0 : i32
    %c0_i32_1 = arith.constant 0 : i32
    return %c0_i32, %c0_i32_0 : i32, i32
  }
  func.func @transform_5(%arg0: i32) -> (i32, i32, i32) {
    %c0_i32 = arith.constant 0 : i32
    %c0_i32_0 = arith.constant 0 : i32
    %c0_i32_1 = arith.constant 0 : i32
    return %arg0, %c0_i32, %c0_i32_0 : i32, i32, i32
  }
}

</mosaic_0001>

<llo_original>
// kernel: tpu_custom_call.1
$region0: #{tpu_custom_call.1}
  #allocation0 [shape = 'u32[]', space=smem, size = 0x4, offset = 0x4, fixed_abs, tag = 'smem constant byte address 0x4 - core index']
  #allocation1 [shape = 'u32[144,128]{1,0:T(1,128)}', space=vmem, size = 0x12000, scoped, tag = 'internal scratch']
  %s0 = inlined_call_operand.hbm [shape: f32[2,8,32], index: 0, kind: input, shape index: {}]
  %s1 = inlined_call_operand.hbm [shape: f32[2,8,64], index: 1, kind: input, shape index: {}]
  %s2 = inlined_call_operand.hbm [shape: f32[32,256], index: 2, kind: input, shape index: {}]
  %s3 = inlined_call_operand.hbm [shape: f32[64,256], index: 3, kind: input, shape index: {}]
  %s4 = inlined_call_operand.vmem [shape: f32[1,256], index: 4, kind: input, shape index: {}]
  %s5 = inlined_call_operand.hbm [shape: f32[2,1,64], index: 5, kind: output, shape index: {}]
  %s6 = sld [smem:[#allocation0]]
  $region69: #{tpu_custom_call.1} parent=0
    _
  %s8 = ssub.s32 1, %s6
  %s9 = scalar_select 0, %s8, %s6
  $region1: #{tpu_custom_call.1} parent=0
    #allocation2 [shape = 'u8[8192]{0}', space=vmem, size = 0x2000, scoped, tag = 'input window, operand 0']
    #allocation3 [shape = 's32[2]{0}', space=sflag, size = 0x8, scoped, tag = 'scoped memory for tpu_custom_call.1']
    #allocation4 [shape = 's32[2]{0}', space=sflag, size = 0x8, scoped, tag = 'scoped memory for tpu_custom_call.1']
    #allocation5 [shape = 'u8[8192]{0}', space=vmem, size = 0x2000, scoped, tag = 'input window, operand 1']
    #allocation6 [shape = 's32[2]{0}', space=sflag, size = 0x8, scoped, tag = 'scoped memory for tpu_custom_call.1']
    #allocation7 [shape = 'u8[32768]{0}', space=vmem, size = 0x8000, scoped, tag = 'input window, operand 2, single buffered']
    #allocation8 [shape = 'u8[65536]{0}', space=vmem, size = 0x10000, scoped, tag = 'input window, operand 3, single buffered']
    #allocation9 [shape = 's32[1]{0}', space=sflag, size = 0x4, scoped, tag = 'scoped memory for tpu_custom_call.1']
    #allocation10 [shape = 'u8[1024]{0}', space=vmem, size = 0x400, scoped, tag = 'output window, operand 0']
    %10 = vsyncpa [#allocation3], 0
    %s11 = scalar_lea.sflag [#allocation3], 1
    %12 = vsyncpa %s11, 0
    %13 = vsyncpa [#allocation6], 0
    %s14 = scalar_lea.sflag [#allocation6], 1
    %15 = vsyncpa %s14, 0
    %16 = vsyncpa [#allocation9], 0
    %17 = vsyncpa [#allocation4], 0
    %s18 = scalar_lea.sflag [#allocation4], 1
    %19 = vsyncpa %s18, 0
    loop: start=0, step=1, limit=4
    $region2: #{tpu_custom_call.1} parent=1 // loop_pre_header
      _
    $region3: #{tpu_custom_call.1} parent=1 // loop_header
      %s21 = sphi 0, %s25
      %p22 = scmp.ge.s32.totalorder %s21, 4
      %s31 = sphi 0, %s33
      %s34 = sphi 0, %s31
      %s35 = sphi 0, %s34
      %s51 = sphi 0, %s35
      %s57 = sphi 0, %s59
      %s60 = sphi 0, %s57
      %s61 = sphi 0, %s60
      %s77 = sphi 0, %s61
      %s81 = sphi 0, %s81
      %s83 = sphi 0, %s81
      %s84 = sphi 0, %s83
      %s98 = sphi 0, %s84
      %s102 = sphi 0, %s102
      %s104 = sphi 0, %s102
      %s105 = sphi 0, %s104
      %s119 = sphi 0, %s105
      %s123 = sphi 0, %s123
      %s125 = sphi 0, %s123
      %s126 = sphi 0, %s125
      %s140 = sphi 0, %s126
      %s146 = sphi 0, %s148
      %s149 = sphi 0, %s146
      %s150 = sphi 0, %s149
      %s166 = sphi 0, %s150
    $region4: #{tpu_custom_call.1} parent=1 // loop_header_branch
      %24 = sbr.rel (%p22) target = $region8
    $region5: #{tpu_custom_call.1} parent=1 // loop_body
      %s26 = ssub.s32 %s21, 1
      %s27 = ssub.s32 %s21, 2
      %s28 = sadd.s32 %s21, 1
      %s29 = ssub.s32 %s21, %s28
      %p30 = scmp.eq.s32.totalorder %s29, 0
      %s32 = sadd.s32 %s31, 1
      %s33 = scalar_select %p30, %s31, %s32
      %p36 = pneg %p30
      %p37 = scmp.eq.s32.totalorder %s21, 1
      %p38 = por %p36, %p37
      %p39 = scmp.ne.s32.totalorder %s31, %s34
      %p40 = scmp.eq.s32.totalorder %s21, 0
      %p41 = por %p39, %p40
      %p42 = scmp.ne.s32.totalorder %s31, %s34
      %p43 = scmp.eq.s32.totalorder %s26, 1
      %p44 = por %p42, %p43
      %p45 = scmp.ne.s32.totalorder %s34, %s35
      %p46 = scmp.eq.s32.totalorder %s26, 0
      %p47 = por %p45, %p46
      %p48 = scmp.ne.s32.totalorder %s34, %s35
      %p49 = scmp.eq.s32.totalorder %s27, 1
      %p50 = por %p48, %p49
      %p52 = scmp.ne.s32.totalorder %s35, %s51
      %p53 = scmp.eq.s32.totalorder %s27, 0
      %p54 = por %p52, %p53
      %s55 = ssub.s32 %s21, %s28
      %p56 = scmp.eq.s32.totalorder %s55, 0
      %s58 = sadd.s32 %s57, 1
      %s59 = scalar_select %p56, %s57, %s58
      %p62 = pneg %p56
      %p63 = scmp.eq.s32.totalorder %s21, 1
      %p64 = por %p62, %p63
      %p65 = scmp.ne.s32.totalorder %s57, %s60
      %p66 = scmp.eq.s32.totalorder %s21, 0
      %p67 = por %p65, %p66
      %p68 = scmp.ne.s32.totalorder %s57, %s60
      %p69 = scmp.eq.s32.totalorder %s26, 1
      %p70 = por %p68, %p69
      %p71 = scmp.ne.s32.totalorder %s60, %s61
      %p72 = scmp.eq.s32.totalorder %s26, 0
      %p73 = por %p71, %p72
      %p74 = scmp.ne.s32.totalorder %s60, %s61
      %p75 = scmp.eq.s32.totalorder %s27, 1
      %p76 = por %p74, %p75
      %p78 = scmp.ne.s32.totalorder %s61, %s77
      %p79 = scmp.eq.s32.totalorder %s27, 0
      %p80 = por %p78, %p79
      %s82 = sadd.s32 %s81, 1
      %p85 = scmp.eq.s32.totalorder %s21, 1
      %p86 = scmp.ne.s32.totalorder %s81, %s83
      %p87 = scmp.eq.s32.totalorder %s21, 0
      %p88 = por %p86, %p87
      %p89 = scmp.ne.s32.totalorder %s81, %s83
      %p90 = scmp.eq.s32.totalorder %s26, 1
      %p91 = por %p89, %p90
      %p92 = scmp.ne.s32.totalorder %s83, %s84
      %p93 = scmp.eq.s32.totalorder %s26, 0
      %p94 = por %p92, %p93
      %p95 = scmp.ne.s32.totalorder %s83, %s84
      %p96 = scmp.eq.s32.totalorder %s27, 1
      %p97 = por %p95, %p96
      %p99 = scmp.ne.s32.totalorder %s84, %s98
      %p100 = scmp.eq.s32.totalorder %s27, 0
      %p101 = por %p99, %p100
      %s103 = sadd.s32 %s102, 1
      %p106 = scmp.eq.s32.totalorder %s21, 1
      %p107 = scmp.ne.s32.totalorder %s102, %s104
      %p108 = scmp.eq.s32.totalorder %s21, 0
      %p109 = por %p107, %p108
      %p110 = scmp.ne.s32.totalorder %s102, %s104
      %p111 = scmp.eq.s32.totalorder %s26, 1
      %p112 = por %p110, %p111
      %p113 = scmp.ne.s32.totalorder %s104, %s105
      %p114 = scmp.eq.s32.totalorder %s26, 0
      %p115 = por %p113, %p114
      %p116 = scmp.ne.s32.totalorder %s104, %s105
      %p117 = scmp.eq.s32.totalorder %s27, 1
      %p118 = por %p116, %p117
      %p120 = scmp.ne.s32.totalorder %s105, %s119
      %p121 = scmp.eq.s32.totalorder %s27, 0
      %p122 = por %p120, %p121
      %s124 = sadd.s32 %s123, 1
      %p127 = scmp.eq.s32.totalorder %s21, 1
      %p128 = scmp.ne.s32.totalorder %s123, %s125
      %p129 = scmp.eq.s32.totalorder %s21, 0
      %p130 = por %p128, %p129
      %p131 = scmp.ne.s32.totalorder %s123, %s125
      %p132 = scmp.eq.s32.totalorder %s26, 1
      %p133 = por %p131, %p132
      %p134 = scmp.ne.s32.totalorder %s125, %s126
      %p135 = scmp.eq.s32.totalorder %s26, 0
      %p136 = por %p134, %p135
      %p137 = scmp.ne.s32.totalorder %s125, %s126
      %p138 = scmp.eq.s32.totalorder %s27, 1
      %p139 = por %p137, %p138
      %p141 = scmp.ne.s32.totalorder %s126, %s140
      %p142 = scmp.eq.s32.totalorder %s27, 0
      %p143 = por %p141, %p142
      %s144 = ssub.s32 %s21, %s28
      %p145 = scmp.eq.s32.totalorder %s144, 0
      %s147 = sadd.s32 %s146, 1
      %s148 = scalar_select %p145, %s146, %s147
      %p151 = pneg %p145
      %p152 = scmp.eq.s32.totalorder %s21, 1
      %p153 = por %p151, %p152
      %p154 = scmp.ne.s32.totalorder %s146, %s149
      %p155 = scmp.eq.s32.totalorder %s21, 0
      %p156 = por %p154, %p155
      %p157 = scmp.ne.s32.totalorder %s146, %s149
      %p158 = scmp.eq.s32.totalorder %s26, 1
      %p159 = por %p157, %p158
      %p160 = scmp.ne.s32.totalorder %s149, %s150
      %p161 = scmp.eq.s32.totalorder %s26, 0
      %p162 = por %p160, %p161
      %p163 = scmp.ne.s32.totalorder %s149, %s150
      %p164 = scmp.eq.s32.totalorder %s27, 1
      %p165 = por %p163, %p164
      %p167 = scmp.ne.s32.totalorder %s150, %s166
      %p168 = scmp.eq.s32.totalorder %s27, 0
      %p169 = por %p167, %p168
      %p170 = scmp.le.s32.totalorder 1, %s21
      %p171 = scmp.lt.s32.totalorder %s21, 3
      %p172 = pnand %p170, %p171
      %p173 = pneg %p172
      // Predicated region
      $region9: #{tpu_custom_call.1} parent=5 // pred_check
        _
      $region10: #{tpu_custom_call.1} parent=5 // pred_check_branch
        %175 = sbr.rel (%p172) target = $region12
      $region11: #{tpu_custom_call.1} parent=5 // pred_region
        %s176 = ssub.s32 %s21, 1
        // Predicated region
        $region13: #{tpu_custom_call.1} parent=11 // pred_check
          %p177 = pneg %p94
        $region14: #{tpu_custom_call.1} parent=11 // pred_check_branch
          %179 = sbr.rel (%p177) target = $region16
        $region15: #{tpu_custom_call.1} parent=11 // pred_region
          %s181 = ssub.s32 1024, 1024
          %182 = vsyncadd [#allocation6], %s181
          %s183 = sshll.u32 [#allocation7], 4
          %s184 = int_to_ptr.vmem [resolvable:$true] %s183
          %189 = dma.hbm_to_vmem [thread:$0]  %s2, 1024, %s184, [#allocation6], 256, 256, 16
        $region16: #{tpu_custom_call.1} parent=11 // pred_fallthru
          _
        // Predicated region
        $region17: #{tpu_custom_call.1} parent=11 // pred_check
          %p190 = pneg %p115
        $region18: #{tpu_custom_call.1} parent=11 // pred_check_branch
          %192 = sbr.rel (%p190) target = $region20
        $region19: #{tpu_custom_call.1} parent=11 // pred_region
          %s194 = ssub.s32 2048, 2048
          %195 = vsyncadd [#allocation9], %s194
          %s196 = sshll.u32 [#allocation8], 4
          %s197 = int_to_ptr.vmem [resolvable:$true] %s196
          %202 = dma.hbm_to_vmem [thread:$0]  %s3, 2048, %s197, [#allocation9], 256, 256, 16
        $region20: #{tpu_custom_call.1} parent=11 // pred_fallthru
          _
        // Predicated region
        $region21: #{tpu_custom_call.1} parent=11 // pred_check
          %p203 = pneg %p136
        $region22: #{tpu_custom_call.1} parent=11 // pred_check_branch
          %205 = sbr.rel (%p203) target = $region24
        $region23: #{tpu_custom_call.1} parent=11 // pred_region
          _
        $region24: #{tpu_custom_call.1} parent=11 // pred_fallthru
          _
      $region12: #{tpu_custom_call.1} parent=5 // pred_fallthru
        _
      %p206 = scmp.lt.s32.totalorder %s21, 2
      // Predicated region
      $region25: #{tpu_custom_call.1} parent=5 // pred_check
        %p207 = pneg %p206
      $region26: #{tpu_custom_call.1} parent=5 // pred_check_branch
        %209 = sbr.rel (%p207) target = $region28
      $region27: #{tpu_custom_call.1} parent=5 // pred_region
        // Predicated region
        $region29: #{tpu_custom_call.1} parent=27 // pred_check
          %p210 = pneg %p41
        $region30: #{tpu_custom_call.1} parent=27 // pred_check_branch
          %212 = sbr.rel (%p210) target = $region32
        $region31: #{tpu_custom_call.1} parent=27 // pred_region
          %s213 = sand.u32 %s31, 1
          %s214 = scalar_lea.sflag [#allocation3], %s213
          %s215 = sand.u32 %s31, 1
          %s216 = smul.addr %s215, 8
          %s217 = scalar_lea.vmem [#allocation2], %s216
          %s219 = ssub.s32 128, 128
          %220 = vsyncadd %s214, %s219
          %s221 = smul.addr %s21, 128
          %s222 = scalar_lea.hbm %s0, %s221
          %s224 = sshll.u32 %s217, 4
          %s225 = int_to_ptr.vmem [resolvable:$true] %s224
          %227 = dma.hbm_to_vmem [thread:$0]  %s222, 128, %s225, %s214
        $region32: #{tpu_custom_call.1} parent=27 // pred_fallthru
          _
        // Predicated region
        $region33: #{tpu_custom_call.1} parent=27 // pred_check
          %p228 = pneg %p67
        $region34: #{tpu_custom_call.1} parent=27 // pred_check_branch
          %230 = sbr.rel (%p228) target = $region36
        $region35: #{tpu_custom_call.1} parent=27 // pred_region
          %s231 = sand.u32 %s21, 1
          %s232 = scalar_lea.sflag [#allocation6], %s231
          %s233 = sand.u32 %s57, 1
          %s234 = smul.addr %s233, 8
          %s235 = scalar_lea.vmem [#allocation5], %s234
          %s237 = ssub.s32 128, 128
          %238 = vsyncadd %s232, %s237
          %s239 = smul.addr %s21, 128
          %s240 = scalar_lea.hbm %s1, %s239
          %s242 = sshll.u32 %s235, 4
          %s243 = int_to_ptr.vmem [resolvable:$true] %s242
          %245 = dma.hbm_to_vmem [thread:$0]  %s240, 128, %s243, %s232
        $region36: #{tpu_custom_call.1} parent=27 // pred_fallthru
          _
      $region28: #{tpu_custom_call.1} parent=5 // pred_fallthru
        _
      %p246 = scmp.le.s32.totalorder 1, %s21
      %p247 = scmp.lt.s32.totalorder %s21, 3
      %p248 = pnand %p246, %p247
      %p249 = pneg %p248
      // Predicated region
      $region37: #{tpu_custom_call.1} parent=5 // pred_check
        _
      $region38: #{tpu_custom_call.1} parent=5 // pred_check_branch
        %251 = sbr.rel (%p248) target = $region40
      $region39: #{tpu_custom_call.1} parent=5 // pred_region
        %s252 = ssub.s32 %s21, 1
        %s253 = sand.u32 %s34, 1
        %s254 = scalar_lea.sflag [#allocation3], %s253
        %s255 = sand.u32 %s34, 1
        %s256 = smul.addr %s255, 8
        %s257 = scalar_lea.vmem [#allocation2], %s256
        // Predicated region
        $region41: #{tpu_custom_call.1} parent=39 // pred_check
          %p258 = pneg %p47
        $region42: #{tpu_custom_call.1} parent=39 // pred_check_branch
          %260 = sbr.rel (%p258) target = $region44
        $region43: #{tpu_custom_call.1} parent=39 // pred_region
          %261 = dma.done %s254, 128
        $region44: #{tpu_custom_call.1} parent=39 // pred_fallthru
          _
        %s262 = sand.u32 %s26, 1
        %s263 = scalar_lea.sflag [#allocation6], %s262
        %s264 = sand.u32 %s60, 1
        %s265 = smul.addr %s264, 8
        %s266 = scalar_lea.vmem [#allocation5], %s265
        // Predicated region
        $region45: #{tpu_custom_call.1} parent=39 // pred_check
          %p267 = pneg %p73
        $region46: #{tpu_custom_call.1} parent=39 // pred_check_branch
          %269 = sbr.rel (%p267) target = $region48
        $region47: #{tpu_custom_call.1} parent=39 // pred_region
          %270 = dma.done %s263, 128
        $region48: #{tpu_custom_call.1} parent=39 // pred_fallthru
          _
        // Predicated region
        $region49: #{tpu_custom_call.1} parent=39 // pred_check
          %p271 = pneg %p94
        $region50: #{tpu_custom_call.1} parent=39 // pred_check_branch
          %273 = sbr.rel (%p271) target = $region52
        $region51: #{tpu_custom_call.1} parent=39 // pred_region
          %274 = dma.done [#allocation6], 1024
        $region52: #{tpu_custom_call.1} parent=39 // pred_fallthru
          _
        // Predicated region
        $region53: #{tpu_custom_call.1} parent=39 // pred_check
          %p275 = pneg %p115
        $region54: #{tpu_custom_call.1} parent=39 // pred_check_branch
          %277 = sbr.rel (%p275) target = $region56
        $region55: #{tpu_custom_call.1} parent=39 // pred_region
          %278 = dma.done [#allocation9], 2048
        $region56: #{tpu_custom_call.1} parent=39 // pred_fallthru
          _
        %s279 = sand.u32 %s34, 1
        %s280 = scalar_lea.sflag [#allocation3], %s279
        %s281 = sand.u32 %s34, 1
        %s282 = smul.addr %s281, 8
        %s283 = scalar_lea.vmem [#allocation2], %s282
        %p284 = pneg %p47
        %p285 = pneg %p44
        %s286 = sand.u32 %s26, 1
        %s287 = scalar_lea.sflag [#allocation6], %s286
        %s288 = sand.u32 %s60, 1
        %s289 = smul.addr %s288, 8
        %s290 = scalar_lea.vmem [#allocation5], %s289
        %p291 = pneg %p73
        %p292 = pneg %p70
        %p293 = pneg %p94
        %p294 = pneg %p91
        %p295 = pneg %p115
        %p296 = pneg %p112
        %p297 = pneg %p136
        %p298 = pneg %p133
        %p299 = pneg %p162
        %p300 = pneg %p159
        %s301 = sand.u32 %s149, 1
        %s302 = scalar_lea.sflag [#allocation4], %s301
        %s303 = sand.u32 %s149, 1
        %s304 = scalar_lea.vmem [#allocation10], %s303
        %v305 = vld [vmem:[%s257] sm:$0xff]
        %v306 = vld [vmem:[%s266] sm:$0xff]
        %v307 = vld [vmem:[#allocation7] sm:$0xff]
        %v308 = vld [vmem:[#allocation7 + $0x8] sm:$0xff]
        %v309 = vld [vmem:[#allocation7 + $0x10] sm:$0xff]
        %v310 = vld [vmem:[#allocation7 + $0x18] sm:$0xff]
        %v311 = vld [vmem:[#allocation7 + $0x20] sm:$0xff]
        %v312 = vld [vmem:[#allocation7 + $0x28] sm:$0xff]
        %v313 = vld [vmem:[#allocation7 + $0x30] sm:$0xff]
        %v314 = vld [vmem:[#allocation7 + $0x38] sm:$0xff]
        %v315 = vld [vmem:[#allocation8] sm:$0xff]
        %v316 = vld [vmem:[#allocation8 + $0x8] sm:$0xff]
        %v317 = vld [vmem:[#allocation8 + $0x10] sm:$0xff]
        %v318 = vld [vmem:[#allocation8 + $0x18] sm:$0xff]
        %v319 = vld [vmem:[#allocation8 + $0x20] sm:$0xff]
        %v320 = vld [vmem:[#allocation8 + $0x28] sm:$0xff]
        %v321 = vld [vmem:[#allocation8 + $0x30] sm:$0xff]
        %v322 = vld [vmem:[#allocation8 + $0x38] sm:$0xff]
        %v323 = vld [vmem:[#allocation8 + $0x40] sm:$0xff]
        %v324 = vld [vmem:[#allocation8 + $0x48] sm:$0xff]
        %v325 = vld [vmem:[#allocation8 + $0x50] sm:$0xff]
        %v326 = vld [vmem:[#allocation8 + $0x58] sm:$0xff]
        %v327 = vld [vmem:[#allocation8 + $0x60] sm:$0xff]
        %v328 = vld [vmem:[#allocation8 + $0x68] sm:$0xff]
        %v329 = vld [vmem:[#allocation8 + $0x70] sm:$0xff]
        %v330 = vld [vmem:[#allocation8 + $0x78] sm:$0xff]
        %v331 = vld [vmem:[%s4] sm:$0x3]
        %v333 = vlaneseq
        %v334 = vshrl.u32 %v333, 7
        %v335 = vsub.s32 0, %v334
        %v336 = vrot.slane %v331, %v335
        %v337 = vlaneseq
        %v338 = vshrl.u32 %v337, 7
        %v339 = vsub.s32 1, %v338
        %v340 = vrot.slane %v331, %v339
        %vm343 = vcmask 261120
        %v345 = vsel %vm343, %v305, 0
        %347 = vmatprep.subr.mxu0 %v308
        %348 = vmatpush1.msra.mxu0 %v307
        %349 = vmatprep.subr.mxu0 %v310
        %350 = vmatpush1.msra.mxu0 %v309
        %351 = vmatprep.subr.mxu0 %v312
        %352 = vmatpush1.msra.mxu0 %v311
        %353 = vmatprep.subr.mxu0 %v314
        %354 = vmatpush1.msra.mxu0 %v313
        %355 = vmatprep.subr.mxu0 0.0
        %356 = vmatpush1.msra.mxu0 0.0
        %357 = vmatprep.subr.mxu0 0.0
        %358 = vmatpush1.msra.mxu0 0.0
        %359 = vmatprep.subr.mxu0 0.0
        %360 = vmatpush1.msra.mxu0 0.0
        %361 = vmatprep.subr.mxu0 0.0
        %362 = vmatpush1.msra.mxu0 0.0
        %363 = vmatprep.subr.mxu0 0.0
        %364 = vmatpush1.msra.mxu0 0.0
        %365 = vmatprep.subr.mxu0 0.0
        %366 = vmatpush1.msra.mxu0 0.0
        %367 = vmatprep.subr.mxu0 0.0
        %368 = vmatpush1.msra.mxu0 0.0
        %369 = vmatprep.subr.mxu0 0.0
        %370 = vmatpush1.msra.mxu0 0.0
        %371 = vmatprep.subr.mxu0 0.0
        %372 = vmatpush1.msra.mxu0 0.0
        %373 = vmatprep.subr.mxu0 0.0
        %374 = vmatpush1.msra.mxu0 0.0
        %375 = vmatprep.subr.mxu0 0.0
        %376 = vmatpush1.msra.mxu0 0.0
        %377 = vmatprep.subr.mxu0 0.0
        %378 = vmatpush1.msra.mxu0 0.0
        %379 = vmatprep.subr.mxu0 0.0
        %380 = vmatpush1.msra.mxu0 0.0
        %381 = vmatprep.subr.mxu0 0.0
        %382 = vmatpush1.msra.mxu0 0.0
        %383 = vmatprep.subr.mxu0 0.0
        %384 = vmatpush1.msra.mxu0 0.0
        %385 = vmatprep.subr.mxu0 0.0
        %386 = vmatpush1.msra.mxu0 0.0
        %387 = vmatprep.subr.mxu0 0.0
        %388 = vmatpush1.msra.mxu0 0.0
        %389 = vmatprep.subr.mxu0 0.0
        %390 = vmatpush1.msra.mxu0 0.0
        %391 = vmatprep.subr.mxu0 0.0
        %392 = vmatpush1.msra.mxu0 0.0
        %393 = vmatprep.subr.mxu0 0.0
        %394 = vmatpush1.msra.mxu0 0.0
        %395 = vmatprep.subr.mxu0 0.0
        %396 = vmatpush1.msra.mxu0 0.0
        %397 = vmatprep.subr.mxu0 0.0
        %398 = vmatpush1.msra.mxu0 0.0
        %399 = vmatprep.subr.mxu0 0.0
        %400 = vmatpush1.msra.mxu0 0.0
        %401 = vmatprep.subr.mxu0 0.0
        %402 = vmatpush1.msra.mxu0 0.0
        %403 = vmatprep.subr.mxu0 0.0
        %404 = vmatpush1.msra.mxu0 0.0
        %405 = vmatprep.subr.mxu0 0.0
        %406 = vmatpush1.msra.mxu0 0.0
        %407 = vmatprep.subr.mxu0 0.0
        %408 = vmatpush1.msra.mxu0 0.0
        %409 = vmatprep.subr.mxu0 0.0
        %410 = vmatpush1.msra.mxu0 0.0
        %411 = vmatprep.mubr.f32.mxu0 0.0
        %412 = vmatmul.mubr.f32.gmra.mrb[0].mxu0 %v345
        %v413 = vpop.f32.mrb[0].mxu0
        %v414 = vadd.f32 %v336, %v413
        %v415 = vpop.f32.mrb[0].mxu0
        %v416 = vadd.f32 %v340, %v415
        %417 = vdwg.mxu0
        %vm418 = vcmask 523264
        %v420 = vsel %vm418, 0.0, 0
        %422 = vmatprep.subr.mxu0 %v316
        %423 = vmatpush1.msra.mxu0 %v315
        %424 = vmatprep.subr.mxu0 %v318
        %425 = vmatpush1.msra.mxu0 %v317
        %426 = vmatprep.subr.mxu0 %v320
        %427 = vmatpush1.msra.mxu0 %v319
        %428 = vmatprep.subr.mxu0 %v322
        %429 = vmatpush1.msra.mxu0 %v321
        %430 = vmatprep.subr.mxu0 %v324
        %431 = vmatpush1.msra.mxu0 %v323
        %432 = vmatprep.subr.mxu0 %v326
        %433 = vmatpush1.msra.mxu0 %v325
        %434 = vmatprep.subr.mxu0 %v328
        %435 = vmatpush1.msra.mxu0 %v327
        %436 = vmatprep.subr.mxu0 %v330
        %437 = vmatpush1.msra.mxu0 %v329
        %438 = vmatprep.subr.mxu0 0.0
        %439 = vmatpush1.msra.mxu0 0.0
        %440 = vmatprep.subr.mxu0 0.0
        %441 = vmatpush1.msra.mxu0 0.0
        %442 = vmatprep.subr.mxu0 0.0
        %443 = vmatpush1.msra.mxu0 0.0
        %444 = vmatprep.subr.mxu0 0.0
        %445 = vmatpush1.msra.mxu0 0.0
        %446 = vmatprep.subr.mxu0 0.0
        %447 = vmatpush1.msra.mxu0 0.0
        %448 = vmatprep.subr.mxu0 0.0
        %449 = vmatpush1.msra.mxu0 0.0
        %450 = vmatprep.subr.mxu0 0.0
        %451 = vmatpush1.msra.mxu0 0.0
        %452 = vmatprep.subr.mxu0 0.0
        %453 = vmatpush1.msra.mxu0 0.0
        %454 = vmatprep.subr.mxu0 0.0
        %455 = vmatpush1.msra.mxu0 0.0
        %456 = vmatprep.subr.mxu0 0.0
        %457 = vmatpush1.msra.mxu0 0.0
        %458 = vmatprep.subr.mxu0 0.0
        %459 = vmatpush1.msra.mxu0 0.0
        %460 = vmatprep.subr.mxu0 0.0
        %461 = vmatpush1.msra.mxu0 0.0
        %462 = vmatprep.subr.mxu0 0.0
        %463 = vmatpush1.msra.mxu0 0.0
        %464 = vmatprep.subr.mxu0 0.0
        %465 = vmatpush1.msra.mxu0 0.0
        %466 = vmatprep.subr.mxu0 0.0
        %467 = vmatpush1.msra.mxu0 0.0
        %468 = vmatprep.subr.mxu0 0.0
        %469 = vmatpush1.msra.mxu0 0.0
        %470 = vmatprep.subr.mxu0 0.0
        %471 = vmatpush1.msra.mxu0 0.0
        %472 = vmatprep.subr.mxu0 0.0
        %473 = vmatpush1.msra.mxu0 0.0
        %474 = vmatprep.subr.mxu0 0.0
        %475 = vmatpush1.msra.mxu0 0.0
        %476 = vmatprep.subr.mxu0 0.0
        %477 = vmatpush1.msra.mxu0 0.0
        %478 = vmatprep.subr.mxu0 0.0
        %479 = vmatpush1.msra.mxu0 0.0
        %480 = vmatprep.subr.mxu0 0.0
        %481 = vmatpush1.msra.mxu0 0.0
        %482 = vmatprep.subr.mxu0 0.0
        %483 = vmatpush1.msra.mxu0 0.0
        %484 = vmatprep.subr.mxu0 0.0
        %485 = vmatpush1.msra.mxu0 0.0
        %486 = vmatprep.mubr.f32.mxu0 0.0
        %487 = vmatmul.mubr.f32.gmra.mrb[0].mxu0 %v420
        %v488 = vpop.f32.mrb[0].mxu0
        %v489 = vadd.f32 0.0, %v488
        %v490 = vpop.f32.mrb[0].mxu0
        %v491 = vadd.f32 0.0, %v490
        %492 = vdwg.mxu0
        %v493 = vadd.f32 %v414, %v489
        %v494 = vadd.f32 %v416, %v491
        %v495 = vxor.u32 %v493, 2147483648
        %v496 = vxor.u32 %v494, 2147483648
        %v497 = vmul.f32 %v495, 1.442695
        %v498 = vpow.pop %v497
        %v499 = vmul.f32 %v496, 1.442695
        %v500 = vpow.pop %v499
        %v501 = vadd.f32 %v498, 1.0
        %v502 = vadd.f32 %v500, 1.0
        %v503 = vrcp.pop %v501
        %v504 = vmul.f32 1.0, %v503
        %v505 = vrcp.pop %v502
        %v506 = vmul.f32 1.0, %v505
        %v507 = vtanh.pop %v494
        %v508 = vmul.f32 %v504, 0.0
        %510 = vrot.lane.b32.xlu0 %v507, 64
        %v511 = vpop.permute.xlu0 %510
        %v513 = vmul.f32 %v504, %v511
        %515 = vrot.lane.b32.xlu0 %v513, 64
        %v516 = vpop.permute.xlu0 %515
        %v518 = vadd.f32 %v508, %v516
        %v519 = vtanh.pop %v518
        %521 = vrot.lane.b32.xlu0 %v519, 64
        %v522 = vpop.permute.xlu0 %521
        %v524 = vmul.f32 %v506, %v522
        %vm525 = vcmp.gt.f32.partialorder %v306, 0.0
        %v526 = vsel %vm525, %v524, 0.0
        %528 = vrot.lane.b32.xlu0 %v518, 64
        %v529 = vpop.permute.xlu0 %528
        %v531 = vsel %vm525, %v529, 0.0
        %v533 = vsel %vm418, %v526, 0
        %535 = vmatprep.subr.mxu0 %v316
        %536 = vmatpush1.msra.mxu0 %v315
        %537 = vmatprep.subr.mxu0 %v318
        %538 = vmatpush1.msra.mxu0 %v317
        %539 = vmatprep.subr.mxu0 %v320
        %540 = vmatpush1.msra.mxu0 %v319
        %541 = vmatprep.subr.mxu0 %v322
        %542 = vmatpush1.msra.mxu0 %v321
        %543 = vmatprep.subr.mxu0 %v324
        %544 = vmatpush1.msra.mxu0 %v323
        %545 = vmatprep.subr.mxu0 %v326
        %546 = vmatpush1.msra.mxu0 %v325
        %547 = vmatprep.subr.mxu0 %v328
        %548 = vmatpush1.msra.mxu0 %v327
        %549 = vmatprep.subr.mxu0 %v330
        %550 = vmatpush1.msra.mxu0 %v329
        %551 = vmatprep.subr.mxu0 0.0
        %552 = vmatpush1.msra.mxu0 0.0
        %553 = vmatprep.subr.mxu0 0.0
        %554 = vmatpush1.msra.mxu0 0.0
        %555 = vmatprep.subr.mxu0 0.0
        %556 = vmatpush1.msra.mxu0 0.0
        %557 = vmatprep.subr.mxu0 0.0
        %558 = vmatpush1.msra.mxu0 0.0
        %559 = vmatprep.subr.mxu0 0.0
        %560 = vmatpush1.msra.mxu0 0.0
        %561 = vmatprep.subr.mxu0 0.0
        %562 = vmatpush1.msra.mxu0 0.0
        %563 = vmatprep.subr.mxu0 0.0
        %564 = vmatpush1.msra.mxu0 0.0
        %565 = vmatprep.subr.mxu0 0.0
        %566 = vmatpush1.msra.mxu0 0.0
        %567 = vmatprep.subr.mxu0 0.0
        %568 = vmatpush1.msra.mxu0 0.0
        %569 = vmatprep.subr.mxu0 0.0
        %570 = vmatpush1.msra.mxu0 0.0
        %571 = vmatprep.subr.mxu0 0.0
        %572 = vmatpush1.msra.mxu0 0.0
        %573 = vmatprep.subr.mxu0 0.0
        %574 = vmatpush1.msra.mxu0 0.0
        %575 = vmatprep.subr.mxu0 0.0
        %576 = vmatpush1.msra.mxu0 0.0
        %577 = vmatprep.subr.mxu0 0.0
        %578 = vmatpush1.msra.mxu0 0.0
        %579 = vmatprep.subr.mxu0 0.0
        %580 = vmatpush1.msra.mxu0 0.0
        %581 = vmatprep.subr.mxu0 0.0
        %582 = vmatpush1.msra.mxu0 0.0
        %583 = vmatprep.subr.mxu0 0.0
        %584 = vmatpush1.msra.mxu0 0.0
        %585 = vmatprep.subr.mxu0 0.0
        %586 = vmatpush1.msra.mxu0 0.0
        %587 = vmatprep.subr.mxu0 0.0
        %588 = vmatpush1.msra.mxu0 0.0
        %589 = vmatprep.subr.mxu0 0.0
        %590 = vmatpush1.msra.mxu0 0.0
        %591 = vmatprep.subr.mxu0 0.0
        %592 = vmatpush1.msra.mxu0 0.0
        %593 = vmatprep.subr.mxu0 0.0
        %594 = vmatpush1.msra.mxu0 0.0
        %595 = vmatprep.subr.mxu0 0.0
        %596 = vmatpush1.msra.mxu0 0.0
        %597 = vmatprep.subr.mxu0 0.0
        %598 = vmatpush1.msra.mxu0 0.0
        %599 = vmatprep.mubr.f32.mxu0 0.0
        %600 = vmatmul.mubr.f32.gmra.mrb[0].mxu0 %v533
        %v601 = vpop.f32.mrb[0].mxu0
        %v602 = vadd.f32 0.0, %v601
        %v603 = vpop.f32.mrb[0].mxu0
        %v604 = vadd.f32 0.0, %v603
        %605 = vdwg.mxu0
        %v608 = vrot.slane %v602, 7
        %v609 = vrot.slane %v604, 7
        %v612 = vadd.f32 %v414, %v608
        %v613 = vadd.f32 %v416, %v609
        %v614 = vxor.u32 %v612, 2147483648
        %v615 = vxor.u32 %v613, 2147483648
        %v616 = vmul.f32 %v614, 1.442695
        %v617 = vpow.pop %v616
        %v618 = vmul.f32 %v615, 1.442695
        %v619 = vpow.pop %v618
        %v620 = vadd.f32 %v617, 1.0
        %v621 = vadd.f32 %v619, 1.0
        %v622 = vrcp.pop %v620
        %v623 = vmul.f32 1.0, %v622
        %v624 = vrcp.pop %v621
        %v625 = vmul.f32 1.0, %v624
        %v626 = vtanh.pop %v613
        %v628 = vrot.slane %v531, 7
        %629 = vrot.lane.b32.xlu0 %v628, 64
        %v630 = vpop.permute.xlu0 %629
        %v632 = vmul.f32 %v623, %v630
        %634 = vrot.lane.b32.xlu0 %v626, 64
        %v635 = vpop.permute.xlu0 %634
        %v637 = vmul.f32 %v623, %v635
        %639 = vrot.lane.b32.xlu0 %v637, 64
        %v640 = vpop.permute.xlu0 %639
        %v642 = vadd.f32 %v632, %v640
        %v643 = vtanh.pop %v642
        %645 = vrot.lane.b32.xlu0 %v643, 64
        %v646 = vpop.permute.xlu0 %645
        %v648 = vmul.f32 %v625, %v646
        %v649 = vrot.slane %v526, 7
        %v651 = vsel %vm525, %v648, %v649
        %653 = vrot.lane.b32.xlu0 %v642, 64
        %v654 = vpop.permute.xlu0 %653
        %v657 = vsel %vm525, %v654, %v628
        %v659 = vrot.slane %v651, 1
        %v660 = vsel %vm418, %v659, 0
        %662 = vmatprep.subr.mxu0 %v316
        %663 = vmatpush1.msra.mxu0 %v315
        %664 = vmatprep.subr.mxu0 %v318
        %665 = vmatpush1.msra.mxu0 %v317
        %666 = vmatprep.subr.mxu0 %v320
        %667 = vmatpush1.msra.mxu0 %v319
        %668 = vmatprep.subr.mxu0 %v322
        %669 = vmatpush1.msra.mxu0 %v321
        %670 = vmatprep.subr.mxu0 %v324
        %671 = vmatpush1.msra.mxu0 %v323
        %672 = vmatprep.subr.mxu0 %v326
        %673 = vmatpush1.msra.mxu0 %v325
        %674 = vmatprep.subr.mxu0 %v328
        %675 = vmatpush1.msra.mxu0 %v327
        %676 = vmatprep.subr.mxu0 %v330
        %677 = vmatpush1.msra.mxu0 %v329
        %678 = vmatprep.subr.mxu0 0.0
        %679 = vmatpush1.msra.mxu0 0.0
        %680 = vmatprep.subr.mxu0 0.0
        %681 = vmatpush1.msra.mxu0 0.0
        %682 = vmatprep.subr.mxu0 0.0
        %683 = vmatpush1.msra.mxu0 0.0
        %684 = vmatprep.subr.mxu0 0.0
        %685 = vmatpush1.msra.mxu0 0.0
        %686 = vmatprep.subr.mxu0 0.0
        %687 = vmatpush1.msra.mxu0 0.0
        %688 = vmatprep.subr.mxu0 0.0
        %689 = vmatpush1.msra.mxu0 0.0
        %690 = vmatprep.subr.mxu0 0.0
        %691 = vmatpush1.msra.mxu0 0.0
        %692 = vmatprep.subr.mxu0 0.0
        %693 = vmatpush1.msra.mxu0 0.0
        %694 = vmatprep.subr.mxu0 0.0
        %695 = vmatpush1.msra.mxu0 0.0
        %696 = vmatprep.subr.mxu0 0.0
        %697 = vmatpush1.msra.mxu0 0.0
        %698 = vmatprep.subr.mxu0 0.0
        %699 = vmatpush1.msra.mxu0 0.0
        %700 = vmatprep.subr.mxu0 0.0
        %701 = vmatpush1.msra.mxu0 0.0
        %702 = vmatprep.subr.mxu0 0.0
        %703 = vmatpush1.msra.mxu0 0.0
        %704 = vmatprep.subr.mxu0 0.0
        %705 = vmatpush1.msra.mxu0 0.0
        %706 = vmatprep.subr.mxu0 0.0
        %707 = vmatpush1.msra.mxu0 0.0
        %708 = vmatprep.subr.mxu0 0.0
        %709 = vmatpush1.msra.mxu0 0.0
        %710 = vmatprep.subr.mxu0 0.0
        %711 = vmatpush1.msra.mxu0 0.0
        %712 = vmatprep.subr.mxu0 0.0
        %713 = vmatpush1.msra.mxu0 0.0
        %714 = vmatprep.subr.mxu0 0.0
        %715 = vmatpush1.msra.mxu0 0.0
        %716 = vmatprep.subr.mxu0 0.0
        %717 = vmatpush1.msra.mxu0 0.0
        %718 = vmatprep.subr.mxu0 0.0
        %719 = vmatpush1.msra.mxu0 0.0
        %720 = vmatprep.subr.mxu0 0.0
        %721 = vmatpush1.msra.mxu0 0.0
        %722 = vmatprep.subr.mxu0 0.0
        %723 = vmatpush1.msra.mxu0 0.0
        %724 = vmatprep.subr.mxu0 0.0
        %725 = vmatpush1.msra.mxu0 0.0
        %726 = vmatprep.mubr.f32.mxu0 0.0
        %727 = vmatmul.mubr.f32.gmra.mrb[0].mxu0 %v660
        %v728 = vpop.f32.mrb[0].mxu0
        %v729 = vadd.f32 0.0, %v728
        %v730 = vpop.f32.mrb[0].mxu0
        %v731 = vadd.f32 0.0, %v730
        %732 = vdwg.mxu0
        %v735 = vrot.slane %v729, 6
        %v736 = vrot.slane %v731, 6
        %v739 = vadd.f32 %v414, %v735
        %v740 = vadd.f32 %v416, %v736
        %v741 = vxor.u32 %v739, 2147483648
        %v742 = vxor.u32 %v740, 2147483648
        %v743 = vmul.f32 %v741, 1.442695
        %v744 = vpow.pop %v743
        %v745 = vmul.f32 %v742, 1.442695
        %v746 = vpow.pop %v745
        %v747 = vadd.f32 %v744, 1.0
        %v748 = vadd.f32 %v746, 1.0
        %v749 = vrcp.pop %v747
        %v750 = vmul.f32 1.0, %v749
        %v751 = vrcp.pop %v748
        %v752 = vmul.f32 1.0, %v751
        %v753 = vtanh.pop %v740
        %v755 = vrot.slane %v657, 7
        %756 = vrot.lane.b32.xlu0 %v755, 64
        %v757 = vpop.permute.xlu0 %756
        %v759 = vmul.f32 %v750, %v757
        %761 = vrot.lane.b32.xlu0 %v753, 64
        %v762 = vpop.permute.xlu0 %761
        %v764 = vmul.f32 %v750, %v762
        %766 = vrot.lane.b32.xlu0 %v764, 64
        %v767 = vpop.permute.xlu0 %766
        %v769 = vadd.f32 %v759, %v767
        %v770 = vtanh.pop %v769
        %772 = vrot.lane.b32.xlu0 %v770, 64
        %v773 = vpop.permute.xlu0 %772
        %v775 = vmul.f32 %v752, %v773
        %v776 = vrot.slane %v651, 7
        %v778 = vsel %vm525, %v775, %v776
        %780 = vrot.lane.b32.xlu0 %v769, 64
        %v781 = vpop.permute.xlu0 %780
        %v784 = vsel %vm525, %v781, %v755
        %v786 = vrot.slane %v778, 2
        %v787 = vsel %vm418, %v786, 0
        %789 = vmatprep.subr.mxu0 %v316
        %790 = vmatpush1.msra.mxu0 %v315
        %791 = vmatprep.subr.mxu0 %v318
        %792 = vmatpush1.msra.mxu0 %v317
        %793 = vmatprep.subr.mxu0 %v320
        %794 = vmatpush1.msra.mxu0 %v319
        %795 = vmatprep.subr.mxu0 %v322
        %796 = vmatpush1.msra.mxu0 %v321
        %797 = vmatprep.subr.mxu0 %v324
        %798 = vmatpush1.msra.mxu0 %v323
        %799 = vmatprep.subr.mxu0 %v326
        %800 = vmatpush1.msra.mxu0 %v325
        %801 = vmatprep.subr.mxu0 %v328
        %802 = vmatpush1.msra.mxu0 %v327
        %803 = vmatprep.subr.mxu0 %v330
        %804 = vmatpush1.msra.mxu0 %v329
        %805 = vmatprep.subr.mxu0 0.0
        %806 = vmatpush1.msra.mxu0 0.0
        %807 = vmatprep.subr.mxu0 0.0
        %808 = vmatpush1.msra.mxu0 0.0
        %809 = vmatprep.subr.mxu0 0.0
        %810 = vmatpush1.msra.mxu0 0.0
        %811 = vmatprep.subr.mxu0 0.0
        %812 = vmatpush1.msra.mxu0 0.0
        %813 = vmatprep.subr.mxu0 0.0
        %814 = vmatpush1.msra.mxu0 0.0
        %815 = vmatprep.subr.mxu0 0.0
        %816 = vmatpush1.msra.mxu0 0.0
        %817 = vmatprep.subr.mxu0 0.0
        %818 = vmatpush1.msra.mxu0 0.0
        %819 = vmatprep.subr.mxu0 0.0
        %820 = vmatpush1.msra.mxu0 0.0
        %821 = vmatprep.subr.mxu0 0.0
        %822 = vmatpush1.msra.mxu0 0.0
        %823 = vmatprep.subr.mxu0 0.0
        %824 = vmatpush1.msra.mxu0 0.0
        %825 = vmatprep.subr.mxu0 0.0
        %826 = vmatpush1.msra.mxu0 0.0
        %827 = vmatprep.subr.mxu0 0.0
        %828 = vmatpush1.msra.mxu0 0.0
        %829 = vmatprep.subr.mxu0 0.0
        %830 = vmatpush1.msra.mxu0 0.0
        %831 = vmatprep.subr.mxu0 0.0
        %832 = vmatpush1.msra.mxu0 0.0
        %833 = vmatprep.subr.mxu0 0.0
        %834 = vmatpush1.msra.mxu0 0.0
        %835 = vmatprep.subr.mxu0 0.0
        %836 = vmatpush1.msra.mxu0 0.0
        %837 = vmatprep.subr.mxu0 0.0
        %838 = vmatpush1.msra.mxu0 0.0
        %839 = vmatprep.subr.mxu0 0.0
        %840 = vmatpush1.msra.mxu0 0.0
        %841 = vmatprep.subr.mxu0 0.0
        %842 = vmatpush1.msra.mxu0 0.0
        %843 = vmatprep.subr.mxu0 0.0
        %844 = vmatpush1.msra.mxu0 0.0
        %845 = vmatprep.subr.mxu0 0.0
        %846 = vmatpush1.msra.mxu0 0.0
        %847 = vmatprep.subr.mxu0 0.0
        %848 = vmatpush1.msra.mxu0 0.0
        %849 = vmatprep.subr.mxu0 0.0
        %850 = vmatpush1.msra.mxu0 0.0
        %851 = vmatprep.subr.mxu0 0.0
        %852 = vmatpush1.msra.mxu0 0.0
        %853 = vmatprep.mubr.f32.mxu0 0.0
        %854 = vmatmul.mubr.f32.gmra.mrb[0].mxu0 %v787
        %v855 = vpop.f32.mrb[0].mxu0
        %v856 = vadd.f32 0.0, %v855
        %v857 = vpop.f32.mrb[0].mxu0
        %v858 = vadd.f32 0.0, %v857
        %859 = vdwg.mxu0
        %v862 = vrot.slane %v856, 5
        %v863 = vrot.slane %v858, 5
        %v866 = vadd.f32 %v414, %v862
        %v867 = vadd.f32 %v416, %v863
        %v868 = vxor.u32 %v866, 2147483648
        %v869 = vxor.u32 %v867, 2147483648
        %v870 = vmul.f32 %v868, 1.442695
        %v871 = vpow.pop %v870
        %v872 = vmul.f32 %v869, 1.442695
        %v873 = vpow.pop %v872
        %v874 = vadd.f32 %v871, 1.0
        %v875 = vadd.f32 %v873, 1.0
        %v876 = vrcp.pop %v874
        %v877 = vmul.f32 1.0, %v876
        %v878 = vrcp.pop %v875
        %v879 = vmul.f32 1.0, %v878
        %v880 = vtanh.pop %v867
        %v882 = vrot.slane %v784, 7
        %883 = vrot.lane.b32.xlu0 %v882, 64
        %v884 = vpop.permute.xlu0 %883
        %v886 = vmul.f32 %v877, %v884
        %888 = vrot.lane.b32.xlu0 %v880, 64
        %v889 = vpop.permute.xlu0 %888
        %v891 = vmul.f32 %v877, %v889
        %893 = vrot.lane.b32.xlu0 %v891, 64
        %v894 = vpop.permute.xlu0 %893
        %v896 = vadd.f32 %v886, %v894
        %v897 = vtanh.pop %v896
        %899 = vrot.lane.b32.xlu0 %v897, 64
        %v900 = vpop.permute.xlu0 %899
        %v902 = vmul.f32 %v879, %v900
        %v903 = vrot.slane %v778, 7
        %v905 = vsel %vm525, %v902, %v903
        %907 = vrot.lane.b32.xlu0 %v896, 64
        %v908 = vpop.permute.xlu0 %907
        %v911 = vsel %vm525, %v908, %v882
        %v913 = vrot.slane %v905, 3
        %v914 = vsel %vm418, %v913, 0
        %916 = vmatprep.subr.mxu0 %v316
        %917 = vmatpush1.msra.mxu0 %v315
        %918 = vmatprep.subr.mxu0 %v318
        %919 = vmatpush1.msra.mxu0 %v317
        %920 = vmatprep.subr.mxu0 %v320
        %921 = vmatpush1.msra.mxu0 %v319
        %922 = vmatprep.subr.mxu0 %v322
        %923 = vmatpush1.msra.mxu0 %v321
        %924 = vmatprep.subr.mxu0 %v324
        %925 = vmatpush1.msra.mxu0 %v323
        %926 = vmatprep.subr.mxu0 %v326
        %927 = vmatpush1.msra.mxu0 %v325
        %928 = vmatprep.subr.mxu0 %v328
        %929 = vmatpush1.msra.mxu0 %v327
        %930 = vmatprep.subr.mxu0 %v330
        %931 = vmatpush1.msra.mxu0 %v329
        %932 = vmatprep.subr.mxu0 0.0
        %933 = vmatpush1.msra.mxu0 0.0
        %934 = vmatprep.subr.mxu0 0.0
        %935 = vmatpush1.msra.mxu0 0.0
        %936 = vmatprep.subr.mxu0 0.0
        %937 = vmatpush1.msra.mxu0 0.0
        %938 = vmatprep.subr.mxu0 0.0
        %939 = vmatpush1.msra.mxu0 0.0
        %940 = vmatprep.subr.mxu0 0.0
        %941 = vmatpush1.msra.mxu0 0.0
        %942 = vmatprep.subr.mxu0 0.0
        %943 = vmatpush1.msra.mxu0 0.0
        %944 = vmatprep.subr.mxu0 0.0
        %945 = vmatpush1.msra.mxu0 0.0
        %946 = vmatprep.subr.mxu0 0.0
        %947 = vmatpush1.msra.mxu0 0.0
        %948 = vmatprep.subr.mxu0 0.0
        %949 = vmatpush1.msra.mxu0 0.0
        %950 = vmatprep.subr.mxu0 0.0
        %951 = vmatpush1.msra.mxu0 0.0
        %952 = vmatprep.subr.mxu0 0.0
        %953 = vmatpush1.msra.mxu0 0.0
        %954 = vmatprep.subr.mxu0 0.0
        %955 = vmatpush1.msra.mxu0 0.0
        %956 = vmatprep.subr.mxu0 0.0
        %957 = vmatpush1.msra.mxu0 0.0
        %958 = vmatprep.subr.mxu0 0.0
        %959 = vmatpush1.msra.mxu0 0.0
        %960 = vmatprep.subr.mxu0 0.0
        %961 = vmatpush1.msra.mxu0 0.0
        %962 = vmatprep.subr.mxu0 0.0
        %963 = vmatpush1.msra.mxu0 0.0
        %964 = vmatprep.subr.mxu0 0.0
        %965 = vmatpush1.msra.mxu0 0.0
        %966 = vmatprep.subr.mxu0 0.0
        %967 = vmatpush1.msra.mxu0 0.0
        %968 = vmatprep.subr.mxu0 0.0
        %969 = vmatpush1.msra.mxu0 0.0
        %970 = vmatprep.subr.mxu0 0.0
        %971 = vmatpush1.msra.mxu0 0.0
        %972 = vmatprep.subr.mxu0 0.0
        %973 = vmatpush1.msra.mxu0 0.0
        %974 = vmatprep.subr.mxu0 0.0
        %975 = vmatpush1.msra.mxu0 0.0
        %976 = vmatprep.subr.mxu0 0.0
        %977 = vmatpush1.msra.mxu0 0.0
        %978 = vmatprep.subr.mxu0 0.0
        %979 = vmatpush1.msra.mxu0 0.0
        %980 = vmatprep.mubr.f32.mxu0 0.0
        %981 = vmatmul.mubr.f32.gmra.mrb[0].mxu0 %v914
        %v982 = vpop.f32.mrb[0].mxu0
        %v983 = vadd.f32 0.0, %v982
        %v984 = vpop.f32.mrb[0].mxu0
        %v985 = vadd.f32 0.0, %v984
        %986 = vdwg.mxu0
        %v989 = vrot.slane %v983, 4
        %v990 = vrot.slane %v985, 4
        %v993 = vadd.f32 %v414, %v989
        %v994 = vadd.f32 %v416, %v990
        %v995 = vxor.u32 %v993, 2147483648
        %v996 = vxor.u32 %v994, 2147483648
        %v997 = vmul.f32 %v995, 1.442695
        %v998 = vpow.pop %v997
        %v999 = vmul.f32 %v996, 1.442695
        %v1000 = vpow.pop %v999
        %v1001 = vadd.f32 %v998, 1.0
        %v1002 = vadd.f32 %v1000, 1.0
        %v1003 = vrcp.pop %v1001
        %v1004 = vmul.f32 1.0, %v1003
        %v1005 = vrcp.pop %v1002
        %v1006 = vmul.f32 1.0, %v1005
        %v1007 = vtanh.pop %v994
        %v1009 = vrot.slane %v911, 7
        %1010 = vrot.lane.b32.xlu0 %v1009, 64
        %v1011 = vpop.permute.xlu0 %1010
        %v1013 = vmul.f32 %v1004, %v1011
        %1015 = vrot.lane.b32.xlu0 %v1007, 64
        %v1016 = vpop.permute.xlu0 %1015
        %v1018 = vmul.f32 %v1004, %v1016
        %1020 = vrot.lane.b32.xlu0 %v1018, 64
        %v1021 = vpop.permute.xlu0 %1020
        %v1023 = vadd.f32 %v1013, %v1021
        %v1024 = vtanh.pop %v1023
        %1026 = vrot.lane.b32.xlu0 %v1024, 64
        %v1027 = vpop.permute.xlu0 %1026
        %v1029 = vmul.f32 %v1006, %v1027
        %v1030 = vrot.slane %v905, 7
        %v1032 = vsel %vm525, %v1029, %v1030
        %1034 = vrot.lane.b32.xlu0 %v1023, 64
        %v1035 = vpop.permute.xlu0 %1034
        %v1038 = vsel %vm525, %v1035, %v1009
        %v1040 = vrot.slane %v1032, 4
        %v1041 = vsel %vm418, %v1040, 0
        %1043 = vmatprep.subr.mxu0 %v316
        %1044 = vmatpush1.msra.mxu0 %v315
        %1045 = vmatprep.subr.mxu0 %v318
        %1046 = vmatpush1.msra.mxu0 %v317
        %1047 = vmatprep.subr.mxu0 %v320
        %1048 = vmatpush1.msra.mxu0 %v319
        %1049 = vmatprep.subr.mxu0 %v322
        %1050 = vmatpush1.msra.mxu0 %v321
        %1051 = vmatprep.subr.mxu0 %v324
        %1052 = vmatpush1.msra.mxu0 %v323
        %1053 = vmatprep.subr.mxu0 %v326
        %1054 = vmatpush1.msra.mxu0 %v325
        %1055 = vmatprep.subr.mxu0 %v328
        %1056 = vmatpush1.msra.mxu0 %v327
        %1057 = vmatprep.subr.mxu0 %v330
        %1058 = vmatpush1.msra.mxu0 %v329
        %1059 = vmatprep.subr.mxu0 0.0
        %1060 = vmatpush1.msra.mxu0 0.0
        %1061 = vmatprep.subr.mxu0 0.0
        %1062 = vmatpush1.msra.mxu0 0.0
        %1063 = vmatprep.subr.mxu0 0.0
        %1064 = vmatpush1.msra.mxu0 0.0
        %1065 = vmatprep.subr.mxu0 0.0
        %1066 = vmatpush1.msra.mxu0 0.0
        %1067 = vmatprep.subr.mxu0 0.0
        %1068 = vmatpush1.msra.mxu0 0.0
        %1069 = vmatprep.subr.mxu0 0.0
        %1070 = vmatpush1.msra.mxu0 0.0
        %1071 = vmatprep.subr.mxu0 0.0
        %1072 = vmatpush1.msra.mxu0 0.0
        %1073 = vmatprep.subr.mxu0 0.0
        %1074 = vmatpush1.msra.mxu0 0.0
        %1075 = vmatprep.subr.mxu0 0.0
        %1076 = vmatpush1.msra.mxu0 0.0
        %1077 = vmatprep.subr.mxu0 0.0
        %1078 = vmatpush1.msra.mxu0 0.0
        %1079 = vmatprep.subr.mxu0 0.0
        %1080 = vmatpush1.msra.mxu0 0.0
        %1081 = vmatprep.subr.mxu0 0.0
        %1082 = vmatpush1.msra.mxu0 0.0
        %1083 = vmatprep.subr.mxu0 0.0
        %1084 = vmatpush1.msra.mxu0 0.0
        %1085 = vmatprep.subr.mxu0 0.0
        %1086 = vmatpush1.msra.mxu0 0.0
        %1087 = vmatprep.subr.mxu0 0.0
        %1088 = vmatpush1.msra.mxu0 0.0
        %1089 = vmatprep.subr.mxu0 0.0
        %1090 = vmatpush1.msra.mxu0 0.0
        %1091 = vmatprep.subr.mxu0 0.0
        %1092 = vmatpush1.msra.mxu0 0.0
        %1093 = vmatprep.subr.mxu0 0.0
        %1094 = vmatpush1.msra.mxu0 0.0
        %1095 = vmatprep.subr.mxu0 0.0
        %1096 = vmatpush1.msra.mxu0 0.0
        %1097 = vmatprep.subr.mxu0 0.0
        %1098 = vmatpush1.msra.mxu0 0.0
        %1099 = vmatprep.subr.mxu0 0.0
        %1100 = vmatpush1.msra.mxu0 0.0
        %1101 = vmatprep.subr.mxu0 0.0
        %1102 = vmatpush1.msra.mxu0 0.0
        %1103 = vmatprep.subr.mxu0 0.0
        %1104 = vmatpush1.msra.mxu0 0.0
        %1105 = vmatprep.subr.mxu0 0.0
        %1106 = vmatpush1.msra.mxu0 0.0
        %1107 = vmatprep.mubr.f32.mxu0 0.0
        %1108 = vmatmul.mubr.f32.gmra.mrb[0].mxu0 %v1041
        %v1109 = vpop.f32.mrb[0].mxu0
        %v1110 = vadd.f32 0.0, %v1109
        %v1111 = vpop.f32.mrb[0].mxu0
        %v1112 = vadd.f32 0.0, %v1111
        %1113 = vdwg.mxu0
        %v1116 = vrot.slane %v1110, 3
        %v1117 = vrot.slane %v1112, 3
        %v1120 = vadd.f32 %v414, %v1116
        %v1121 = vadd.f32 %v416, %v1117
        %v1122 = vxor.u32 %v1120, 2147483648
        %v1123 = vxor.u32 %v1121, 2147483648
        %v1124 = vmul.f32 %v1122, 1.442695
        %v1125 = vpow.pop %v1124
        %v1126 = vmul.f32 %v1123, 1.442695
        %v1127 = vpow.pop %v1126
        %v1128 = vadd.f32 %v1125, 1.0
        %v1129 = vadd.f32 %v1127, 1.0
        %v1130 = vrcp.pop %v1128
        %v1131 = vmul.f32 1.0, %v1130
        %v1132 = vrcp.pop %v1129
        %v1133 = vmul.f32 1.0, %v1132
        %v1134 = vtanh.pop %v1121
        %v1136 = vrot.slane %v1038, 7
        %1137 = vrot.lane.b32.xlu0 %v1136, 64
        %v1138 = vpop.permute.xlu0 %1137
        %v1140 = vmul.f32 %v1131, %v1138
        %1142 = vrot.lane.b32.xlu0 %v1134, 64
        %v1143 = vpop.permute.xlu0 %1142
        %v1145 = vmul.f32 %v1131, %v1143
        %1147 = vrot.lane.b32.xlu0 %v1145, 64
        %v1148 = vpop.permute.xlu0 %1147
        %v1150 = vadd.f32 %v1140, %v1148
        %v1151 = vtanh.pop %v1150
        %1153 = vrot.lane.b32.xlu0 %v1151, 64
        %v1154 = vpop.permute.xlu0 %1153
        %v1156 = vmul.f32 %v1133, %v1154
        %v1157 = vrot.slane %v1032, 7
        %v1159 = vsel %vm525, %v1156, %v1157
        %1161 = vrot.lane.b32.xlu0 %v1150, 64
        %v1162 = vpop.permute.xlu0 %1161
        %v1165 = vsel %vm525, %v1162, %v1136
        %v1167 = vrot.slane %v1159, 5
        %v1168 = vsel %vm418, %v1167, 0
        %1170 = vmatprep.subr.mxu0 %v316
        %1171 = vmatpush1.msra.mxu0 %v315
        %1172 = vmatprep.subr.mxu0 %v318
        %1173 = vmatpush1.msra.mxu0 %v317
        %1174 = vmatprep.subr.mxu0 %v320
        %1175 = vmatpush1.msra.mxu0 %v319
        %1176 = vmatprep.subr.mxu0 %v322
        %1177 = vmatpush1.msra.mxu0 %v321
        %1178 = vmatprep.subr.mxu0 %v324
        %1179 = vmatpush1.msra.mxu0 %v323
        %1180 = vmatprep.subr.mxu0 %v326
        %1181 = vmatpush1.msra.mxu0 %v325
        %1182 = vmatprep.subr.mxu0 %v328
        %1183 = vmatpush1.msra.mxu0 %v327
        %1184 = vmatprep.subr.mxu0 %v330
        %1185 = vmatpush1.msra.mxu0 %v329
        %1186 = vmatprep.subr.mxu0 0.0
        %1187 = vmatpush1.msra.mxu0 0.0
        %1188 = vmatprep.subr.mxu0 0.0
        %1189 = vmatpush1.msra.mxu0 0.0
        %1190 = vmatprep.subr.mxu0 0.0
        %1191 = vmatpush1.msra.mxu0 0.0
        %1192 = vmatprep.subr.mxu0 0.0
        %1193 = vmatpush1.msra.mxu0 0.0
        %1194 = vmatprep.subr.mxu0 0.0
        %1195 = vmatpush1.msra.mxu0 0.0
        %1196 = vmatprep.subr.mxu0 0.0
        %1197 = vmatpush1.msra.mxu0 0.0
        %1198 = vmatprep.subr.mxu0 0.0
        %1199 = vmatpush1.msra.mxu0 0.0
        %1200 = vmatprep.subr.mxu0 0.0
        %1201 = vmatpush1.msra.mxu0 0.0
        %1202 = vmatprep.subr.mxu0 0.0
        %1203 = vmatpush1.msra.mxu0 0.0
        %1204 = vmatprep.subr.mxu0 0.0
        %1205 = vmatpush1.msra.mxu0 0.0
        %1206 = vmatprep.subr.mxu0 0.0
        %1207 = vmatpush1.msra.mxu0 0.0
        %1208 = vmatprep.subr.mxu0 0.0
        %1209 = vmatpush1.msra.mxu0 0.0
        %1210 = vmatprep.subr.mxu0 0.0
        %1211 = vmatpush1.msra.mxu0 0.0
        %1212 = vmatprep.subr.mxu0 0.0
        %1213 = vmatpush1.msra.mxu0 0.0
        %1214 = vmatprep.subr.mxu0 0.0
        %1215 = vmatpush1.msra.mxu0 0.0
        %1216 = vmatprep.subr.mxu0 0.0
        %1217 = vmatpush1.msra.mxu0 0.0
        %1218 = vmatprep.subr.mxu0 0.0
        %1219 = vmatpush1.msra.mxu0 0.0
        %1220 = vmatprep.subr.mxu0 0.0
        %1221 = vmatpush1.msra.mxu0 0.0
        %1222 = vmatprep.subr.mxu0 0.0
        %1223 = vmatpush1.msra.mxu0 0.0
        %1224 = vmatprep.subr.mxu0 0.0
        %1225 = vmatpush1.msra.mxu0 0.0
        %1226 = vmatprep.subr.mxu0 0.0
        %1227 = vmatpush1.msra.mxu0 0.0
        %1228 = vmatprep.subr.mxu0 0.0
        %1229 = vmatpush1.msra.mxu0 0.0
        %1230 = vmatprep.subr.mxu0 0.0
        %1231 = vmatpush1.msra.mxu0 0.0
        %1232 = vmatprep.subr.mxu0 0.0
        %1233 = vmatpush1.msra.mxu0 0.0
        %1234 = vmatprep.mubr.f32.mxu0 0.0
        %1235 = vmatmul.mubr.f32.gmra.mrb[0].mxu0 %v1168
        %v1236 = vpop.f32.mrb[0].mxu0
        %v1237 = vadd.f32 0.0, %v1236
        %v1238 = vpop.f32.mrb[0].mxu0
        %v1239 = vadd.f32 0.0, %v1238
        %1240 = vdwg.mxu0
        %v1243 = vrot.slane %v1237, 2
        %v1244 = vrot.slane %v1239, 2
        %v1247 = vadd.f32 %v414, %v1243
        %v1248 = vadd.f32 %v416, %v1244
        %v1249 = vxor.u32 %v1247, 2147483648
        %v1250 = vxor.u32 %v1248, 2147483648
        %v1251 = vmul.f32 %v1249, 1.442695
        %v1252 = vpow.pop %v1251
        %v1253 = vmul.f32 %v1250, 1.442695
        %v1254 = vpow.pop %v1253
        %v1255 = vadd.f32 %v1252, 1.0
        %v1256 = vadd.f32 %v1254, 1.0
        %v1257 = vrcp.pop %v1255
        %v1258 = vmul.f32 1.0, %v1257
        %v1259 = vrcp.pop %v1256
        %v1260 = vmul.f32 1.0, %v1259
        %v1261 = vtanh.pop %v1248
        %v1263 = vrot.slane %v1165, 7
        %1264 = vrot.lane.b32.xlu0 %v1263, 64
        %v1265 = vpop.permute.xlu0 %1264
        %v1267 = vmul.f32 %v1258, %v1265
        %1269 = vrot.lane.b32.xlu0 %v1261, 64
        %v1270 = vpop.permute.xlu0 %1269
        %v1272 = vmul.f32 %v1258, %v1270
        %1274 = vrot.lane.b32.xlu0 %v1272, 64
        %v1275 = vpop.permute.xlu0 %1274
        %v1277 = vadd.f32 %v1267, %v1275
        %v1278 = vtanh.pop %v1277
        %1280 = vrot.lane.b32.xlu0 %v1278, 64
        %v1281 = vpop.permute.xlu0 %1280
        %v1283 = vmul.f32 %v1260, %v1281
        %v1284 = vrot.slane %v1159, 7
        %v1286 = vsel %vm525, %v1283, %v1284
        %1288 = vrot.lane.b32.xlu0 %v1277, 64
        %v1289 = vpop.permute.xlu0 %1288
        %v1292 = vsel %vm525, %v1289, %v1263
        %v1294 = vrot.slane %v1286, 6
        %v1295 = vsel %vm418, %v1294, 0
        %1297 = vmatprep.subr.mxu0 %v316
        %1298 = vmatpush1.msra.mxu0 %v315
        %1299 = vmatprep.subr.mxu0 %v318
        %1300 = vmatpush1.msra.mxu0 %v317
        %1301 = vmatprep.subr.mxu0 %v320
        %1302 = vmatpush1.msra.mxu0 %v319
        %1303 = vmatprep.subr.mxu0 %v322
        %1304 = vmatpush1.msra.mxu0 %v321
        %1305 = vmatprep.subr.mxu0 %v324
        %1306 = vmatpush1.msra.mxu0 %v323
        %1307 = vmatprep.subr.mxu0 %v326
        %1308 = vmatpush1.msra.mxu0 %v325
        %1309 = vmatprep.subr.mxu0 %v328
        %1310 = vmatpush1.msra.mxu0 %v327
        %1311 = vmatprep.subr.mxu0 %v330
        %1312 = vmatpush1.msra.mxu0 %v329
        %1313 = vmatprep.subr.mxu0 0.0
        %1314 = vmatpush1.msra.mxu0 0.0
        %1315 = vmatprep.subr.mxu0 0.0
        %1316 = vmatpush1.msra.mxu0 0.0
        %1317 = vmatprep.subr.mxu0 0.0
        %1318 = vmatpush1.msra.mxu0 0.0
        %1319 = vmatprep.subr.mxu0 0.0
        %1320 = vmatpush1.msra.mxu0 0.0
        %1321 = vmatprep.subr.mxu0 0.0
        %1322 = vmatpush1.msra.mxu0 0.0
        %1323 = vmatprep.subr.mxu0 0.0
        %1324 = vmatpush1.msra.mxu0 0.0
        %1325 = vmatprep.subr.mxu0 0.0
        %1326 = vmatpush1.msra.mxu0 0.0
        %1327 = vmatprep.subr.mxu0 0.0
        %1328 = vmatpush1.msra.mxu0 0.0
        %1329 = vmatprep.subr.mxu0 0.0
        %1330 = vmatpush1.msra.mxu0 0.0
        %1331 = vmatprep.subr.mxu0 0.0
        %1332 = vmatpush1.msra.mxu0 0.0
        %1333 = vmatprep.subr.mxu0 0.0
        %1334 = vmatpush1.msra.mxu0 0.0
        %1335 = vmatprep.subr.mxu0 0.0
        %1336 = vmatpush1.msra.mxu0 0.0
        %1337 = vmatprep.subr.mxu0 0.0
        %1338 = vmatpush1.msra.mxu0 0.0
        %1339 = vmatprep.subr.mxu0 0.0
        %1340 = vmatpush1.msra.mxu0 0.0
        %1341 = vmatprep.subr.mxu0 0.0
        %1342 = vmatpush1.msra.mxu0 0.0
        %1343 = vmatprep.subr.mxu0 0.0
        %1344 = vmatpush1.msra.mxu0 0.0
        %1345 = vmatprep.subr.mxu0 0.0
        %1346 = vmatpush1.msra.mxu0 0.0
        %1347 = vmatprep.subr.mxu0 0.0
        %1348 = vmatpush1.msra.mxu0 0.0
        %1349 = vmatprep.subr.mxu0 0.0
        %1350 = vmatpush1.msra.mxu0 0.0
        %1351 = vmatprep.subr.mxu0 0.0
        %1352 = vmatpush1.msra.mxu0 0.0
        %1353 = vmatprep.subr.mxu0 0.0
        %1354 = vmatpush1.msra.mxu0 0.0
        %1355 = vmatprep.subr.mxu0 0.0
        %1356 = vmatpush1.msra.mxu0 0.0
        %1357 = vmatprep.subr.mxu0 0.0
        %1358 = vmatpush1.msra.mxu0 0.0
        %1359 = vmatprep.subr.mxu0 0.0
        %1360 = vmatpush1.msra.mxu0 0.0
        %1361 = vmatprep.mubr.f32.mxu0 0.0
        %1362 = vmatmul.mubr.f32.gmra.mrb[0].mxu0 %v1295
        %v1363 = vpop.f32.mrb[0].mxu0
        %v1364 = vadd.f32 0.0, %v1363
        %v1365 = vpop.f32.mrb[0].mxu0
        %v1366 = vadd.f32 0.0, %v1365
        %1367 = vdwg.mxu0
        %v1370 = vrot.slane %v1364, 1
        %v1371 = vrot.slane %v1366, 1
        %v1374 = vadd.f32 %v414, %v1370
        %v1375 = vadd.f32 %v416, %v1371
        %v1376 = vxor.u32 %v1374, 2147483648
        %v1377 = vxor.u32 %v1375, 2147483648
        %v1378 = vmul.f32 %v1376, 1.442695
        %v1379 = vpow.pop %v1378
        %v1380 = vmul.f32 %v1377, 1.442695
        %v1381 = vpow.pop %v1380
        %v1382 = vadd.f32 %v1379, 1.0
        %v1383 = vadd.f32 %v1381, 1.0
        %v1384 = vrcp.pop %v1382
        %v1385 = vmul.f32 1.0, %v1384
        %v1386 = vrcp.pop %v1383
        %v1387 = vmul.f32 1.0, %v1386
        %v1388 = vtanh.pop %v1375
        %v1390 = vrot.slane %v1292, 7
        %1391 = vrot.lane.b32.xlu0 %v1390, 64
        %v1392 = vpop.permute.xlu0 %1391
        %v1394 = vmul.f32 %v1385, %v1392
        %1396 = vrot.lane.b32.xlu0 %v1388, 64
        %v1397 = vpop.permute.xlu0 %1396
        %v1399 = vmul.f32 %v1385, %v1397
        %1401 = vrot.lane.b32.xlu0 %v1399, 64
        %v1402 = vpop.permute.xlu0 %1401
        %v1404 = vadd.f32 %v1394, %v1402
        %v1405 = vtanh.pop %v1404
        %1407 = vrot.lane.b32.xlu0 %v1405, 64
        %v1408 = vpop.permute.xlu0 %1407
        %v1410 = vmul.f32 %v1387, %v1408
        %v1411 = vrot.slane %v1286, 7
        %v1413 = vsel %vm525, %v1410, %v1411
        %vm1414 = vcmask 523271
        %1415 = vst.msk [vmem:[%s304 - $0x7] sm:$0x80] %vm1414, %v1413
        %s1416 = sand.u32 %s149, 1
        %s1417 = scalar_lea.sflag [#allocation4], %s1416
        %s1418 = sand.u32 %s149, 1
        %s1419 = scalar_lea.vmem [#allocation10], %s1418
        // Predicated region
        $region57: #{tpu_custom_call.1} parent=39 // pred_check
          %p1420 = pneg %p159
        $region58: #{tpu_custom_call.1} parent=39 // pred_check_branch
          %1422 = sbr.rel (%p1420) target = $region60
        $region59: #{tpu_custom_call.1} parent=39 // pred_region
          %s1424 = ssub.s32 16, 16
          %1425 = vsyncadd %s1417, %s1424
          %s1426 = smul.addr %s26, 16
          %s1427 = scalar_lea.hbm %s5, %s1426
          %s1429 = sshll.u32 %s1419, 4
          %s1430 = int_to_ptr.vmem [resolvable:$true] %s1429
          %1432 = dma.vmem_to_hbm [thread:$0]  %s1430, 16, %s1427, %s1417
        $region60: #{tpu_custom_call.1} parent=39 // pred_fallthru
          _
      $region40: #{tpu_custom_call.1} parent=5 // pred_fallthru
        _
      %p1433 = scmp.le.s32.totalorder 2, %s21
      // Predicated region
      $region61: #{tpu_custom_call.1} parent=5 // pred_check
        %p1434 = pneg %p1433
      $region62: #{tpu_custom_call.1} parent=5 // pred_check_branch
        %1436 = sbr.rel (%p1434) target = $region64
      $region63: #{tpu_custom_call.1} parent=5 // pred_region
        %s1437 = ssub.s32 %s21, 2
        // Predicated region
        $region65: #{tpu_custom_call.1} parent=63 // pred_check
          %p1438 = pneg %p165
        $region66: #{tpu_custom_call.1} parent=63 // pred_check_branch
          %1440 = sbr.rel (%p1438) target = $region68
        $region67: #{tpu_custom_call.1} parent=63 // pred_region
          %s1441 = sand.u32 %s150, 1
          %s1442 = scalar_lea.sflag [#allocation4], %s1441
          %s1443 = sand.u32 %s150, 1
          %s1444 = scalar_lea.vmem [#allocation10], %s1443
          %1445 = dma.done %s1442, 16
        $region68: #{tpu_custom_call.1} parent=63 // pred_fallthru
          _
      $region64: #{tpu_custom_call.1} parent=5 // pred_fallthru
        _
    $region6: #{tpu_custom_call.1} parent=1 // loop_footer
      %s25 = sadd.s32 1, %s21
    $region7: #{tpu_custom_call.1} parent=1 // loop_footer_branch
      %20 = sbr.rel target = $region3
    $region8: #{tpu_custom_call.1} parent=1 // loop_exit
      _
    %1446 = vsyncpa [#allocation3], 1
    %s1447 = scalar_lea.sflag [#allocation3], 1
    %1448 = vsyncpa %s1447, 1
    %1449 = vsyncpa [#allocation6], 1
    %s1450 = scalar_lea.sflag [#allocation6], 1
    %1451 = vsyncpa %s1450, 1
    %1452 = vsyncpa [#allocation9], 1
    %1453 = vsyncpa [#allocation4], 1
    %s1454 = scalar_lea.sflag [#allocation4], 1
    %1455 = vsyncpa %s1454, 1

</llo_original>
